<compile_context>
chip_gen: v6e
topology: v6e:2x2x1
jax: 0.10.0
libtpu: 0.0.40
codegen_flags: <defaults>
</compile_context>

<pallas_src>
import functools
import math

import jax
import jax.numpy as jnp
from jax import lax
from jax.experimental import pallas as pl
from jax.experimental.pallas import tpu as pltpu

_LANE = 128
_MASK_VALUE = -1e30          # finite mask value: avoids inf-inf -> NaN hazards


# ----------------------------------------------------------------------------
# helpers
# ----------------------------------------------------------------------------
def _round_up(x, m):
    return (x + m - 1) // m * m


def _pick_tile(dim, target, align):
    """Largest `align`-aligned divisor of `dim` that is <= target
    (or `dim` itself when dim <= target).  Never returns an unaligned tile."""
    if dim <= target:
        return dim
    t = (target // align) * align
    while t >= align:
        if dim % t == 0:
            return t
        t -= align
    raise ValueError(
        f"no {align}-aligned tile <= {target} divides {dim}; pad the dimension")


# ----------------------------------------------------------------------------
# Kernel 1: tiled linear  y = x @ W + b   (W stored (Cin, Cout))
# ----------------------------------------------------------------------------
def _linear_kernel_f32(x_ref, w_ref, b_ref, o_ref):
    # f32 output: accumulate directly into the VMEM-resident output block
    # (its block index ignores k), bias folded into the k==0 init.
    k = pl.program_id(2)

    @pl.when(k == 0)
    def _init():
        o_ref[...] = jnp.broadcast_to(b_ref[...], o_ref.shape)

    o_ref[...] += jnp.dot(x_ref[...], w_ref[...],
                          preferred_element_type=jnp.float32)


def _linear_kernel_acc(x_ref, w_ref, b_ref, o_ref, acc_ref):
    # non-f32 output: keep an f32 scratch accumulator, cast once at the end.
    k = pl.program_id(2)

    @pl.when(k == 0)
    def _init():
        acc_ref[...] = jnp.broadcast_to(b_ref[...].astype(jnp.float32),
                                        acc_ref.shape)

    acc_ref[...] += jnp.dot(x_ref[...], w_ref[...],
                            preferred_element_type=jnp.float32)

    @pl.when(k == pl.num_programs(2) - 1)
    def _finalize():
        o_ref[...] = acc_ref[...].astype(o_ref.dtype)


def pallas_linear(x2d, w, b, *, tm_target=512, tn_target=512, tk_target=512):
    """x2d: (M, Cin), w: (Cin, Cout), b: (Cout,) -> (M, Cout)."""
    M, K = x2d.shape
    K2, N = w.shape
    assert K == K2
    assert N % _LANE == 0 and K % _LANE == 0, "pad weights to 128-multiples"

    sub = 16 if x2d.dtype == jnp.bfloat16 else 8
    tn = _pick_tile(N, tn_target, _LANE)
    tk = _pick_tile(K, tk_target, _LANE)
    tm = tm_target if M >= tm_target else _round_up(M, sub)
    Mp = _round_up(M, tm)
    if Mp != M:
        x2d = jnp.pad(x2d, ((0, Mp - M), (0, 0)))

    grid = (Mp // tm, N // tn, K // tk)
    f32_out = (x2d.dtype == jnp.float32)
    kernel = _linear_kernel_f32 if f32_out else _linear_kernel_acc
    scratch = [] if f32_out else [pltpu.VMEM((tm, tn), jnp.float32)]

    out = pl.pallas_call(
        kernel,
        out_shape=jax.ShapeDtypeStruct((Mp, N), x2d.dtype),
        grid=grid,
        in_specs=[
            pl.BlockSpec((tm, tk), lambda i, j, k: (i, k)),
            pl.BlockSpec((tk, tn), lambda i, j, k: (k, j)),
            pl.BlockSpec((1, tn), lambda i, j, k: (0, j)),
        ],
        out_specs=pl.BlockSpec((tm, tn), lambda i, j, k: (i, j)),
        scratch_shapes=scratch,
        compiler_params=pltpu.CompilerParams(
            dimension_semantics=("parallel", "parallel", "arbitrary"),
            vmem_limit_bytes=32 * 1024 * 1024),
    )(x2d, w, b.reshape(1, N))
    return out[:M] if Mp != M else out


# ----------------------------------------------------------------------------
# Kernel 2: flash-style causal attention over the packed (B, T, 3C) qkv tensor
# ----------------------------------------------------------------------------
def _flash_attn_kernel(q_ref, k_ref, v_ref, o_ref, m_sc, l_sc, acc_sc, q_sc,
                       *, n_head, head_dim, tq, tkv):
    H, D = n_head, head_dim
    qi = pl.program_id(1)
    kj = pl.program_id(2)
    q_start = qi * tq
    k_start = kj * tkv
    scale = 1.0 / math.sqrt(D)

    @pl.when(kj == 0)
    def _init():
        m_sc[...] = jnp.full_like(m_sc, _MASK_VALUE)
        l_sc[...] = jnp.zeros_like(l_sc)
        acc_sc[...] = jnp.zeros_like(acc_sc)
        # hoist 1/sqrt(D) and the head split of q out of the kv loop
        q = q_ref[0] * scale                                       # (tq, C)
        q_sc[...] = jnp.stack(
            [q[:, h * D:(h + 1) * D] for h in range(H)], axis=0)   # (H, tq, D)

    def step(apply_mask):
        k_blk = k_ref[0]                                           # (tkv, C)
        v_blk = v_ref[0]
        k3 = jnp.stack([k_blk[:, h * D:(h + 1) * D] for h in range(H)], axis=0)
        v3 = jnp.stack([v_blk[:, h * D:(h + 1) * D] for h in range(H)], axis=0)
        s = jnp.einsum("hqd,hkd->hqk", q_sc[...], k3,
                       preferred_element_type=jnp.float32)         # (H, tq, tkv)
        if apply_mask:   # only diagonal blocks pay for iota/compare/select
            row = q_start + lax.broadcasted_iota(jnp.int32, (tq, tkv), 0)
            col = k_start + lax.broadcasted_iota(jnp.int32, (tq, tkv), 1)
            s = jnp.where((col <= row)[None, :, :], s, _MASK_VALUE)

        m_prev = m_sc[...]                              # (H, tq, 128) replicated
        m_new = jnp.maximum(m_prev, jnp.max(s, axis=-1, keepdims=True))
        alpha = jnp.exp(m_prev - m_new)
        p = jnp.exp(s - m_new[..., 0:1])
        l_sc[...] = alpha * l_sc[...] + jnp.sum(p, axis=-1, keepdims=True)
        pv = jnp.einsum("hqk,hkd->hqd", p.astype(v3.dtype), v3,
                        preferred_element_type=jnp.float32)        # (H, tq, D)
        acc_sc[...] = alpha[..., 0:1] * acc_sc[...] + pv
        m_sc[...] = m_new

    # interior block: fully below the causal diagonal -> no masking work
    @pl.when(k_start + tkv - 1 <= q_start)
    def _interior():
        step(False)

    # diagonal block: straddles the causal boundary -> masked path
    @pl.when(jnp.logical_and(k_start <= q_start + tq - 1,
                             k_start + tkv - 1 > q_start))
    def _diag():
        step(True)

    # fully-masked upper-triangular blocks: no compute, and no DMA either
    # (kv index_map clamps the block index -> repeated index elides the copy).

    @pl.when(kj == pl.num_programs(2) - 1)
    def _finalize():
        l = l_sc[..., 0:1]
        inv = pl.reciprocal(l, approx=True)
        inv = inv * (2.0 - l * inv)          # one Newton step -> ~f32-exact
        out = acc_sc[...] * inv              # (H, tq, D) f32
        o_ref[0] = jnp.concatenate(
            [out[h] for h in range(H)], axis=-1).astype(o_ref.dtype)


def pallas_flash_attention(qkv, n_head, *, tq_target=256, tkv_target=256):
    """qkv: (B, T, 3C) packed projection output -> (B, T, C) attention output."""
    B, T, C3 = qkv.shape
    C = C3 // 3
    assert 3 * C == C3 and C % n_head == 0
    assert C % _LANE == 0, "n_embd must be a multiple of 128"
    D = C // n_head

    sub = 16 if qkv.dtype == jnp.bfloat16 else 8
    align = _LANE if T % _LANE == 0 else sub
    tq = _pick_tile(T, tq_target, align)
    tkv = _pick_tile(T, tkv_target, align)
    grid = (B, T // tq, T // tkv)

    def q_map(b, i, j):
        return (b, i, 0)

    def kv_map_col(col):
        def kv_map(b, i, j):
            # clamp to the last causally-needed kv block so upper-triangular
            # blocks are never fetched (repeated block index -> no DMA)
            last = (i * tq + tq - 1) // tkv
            return (b, jnp.minimum(j, last), col)
        return kv_map

    kernel = functools.partial(_flash_attn_kernel, n_head=n_head, head_dim=D,
                               tq=tq, tkv=tkv)

    return pl.pallas_call(
        kernel,
        out_shape=jax.ShapeDtypeStruct((B, T, C), qkv.dtype),
        grid=grid,
        in_specs=[
            pl.BlockSpec((1, tq, C), q_map),            # q   = cols [0,   C)
            pl.BlockSpec((1, tkv, C), kv_map_col(1)),   # k   = cols [C,  2C)
            pl.BlockSpec((1, tkv, C), kv_map_col(2)),   # v   = cols [2C, 3C)
        ],
        out_specs=pl.BlockSpec((1, tq, C), q_map),
        scratch_shapes=[
            pltpu.VMEM((n_head, tq, _LANE), jnp.float32),  # running max (lane-rep)
            pltpu.VMEM((n_head, tq, _LANE), jnp.float32),  # running denom
            pltpu.VMEM((n_head, tq, D), jnp.float32),      # output accumulator
            pltpu.VMEM((n_head, tq, D), qkv.dtype),        # pre-scaled split q
        ],
        compiler_params=pltpu.CompilerParams(
            dimension_semantics=("parallel", "parallel", "arbitrary"),
            vmem_limit_bytes=32 * 1024 * 1024),
    )(qkv, qkv, qkv)


# ----------------------------------------------------------------------------
# Full module forward (glue in plain JAX — no transposes, only free reshapes)
# ----------------------------------------------------------------------------
def causal_self_attention(x, params, n_head):
    B, T, C = x.shape
    assert C % n_head == 0
    qkv = pallas_linear(x.reshape(B * T, C), params["w_attn"], params["b_attn"])
    qkv = qkv.reshape(B, T, 3 * C)              # leading-dim split: free
    y = pallas_flash_attention(qkv, n_head)     # (B, T, C), heads split in-kernel
    y = pallas_linear(y.reshape(B * T, C), params["w_proj"], params["b_proj"])
    return y.reshape(B, T, C)


# ----------------------------------------------------------------------------
# Pure-JAX reference for correctness check
# ----------------------------------------------------------------------------
def reference_forward(x, params, n_head):
    B, T, C = x.shape
    D = C // n_head
    qkv = x @ params["w_attn"] + params["b_attn"]
    q, k, v = jnp.split(qkv, 3, axis=2)
    q = q.reshape(B, T, n_head, D).transpose(0, 2, 1, 3)
    k = k.reshape(B, T, n_head, D).transpose(0, 2, 1, 3)
    v = v.reshape(B, T, n_head, D).transpose(0, 2, 1, 3)
    s = jnp.einsum("bhqd,bhkd->bhqk", q, k) / math.sqrt(D)
    mask = jnp.tril(jnp.ones((T, T), dtype=bool))
    s = jnp.where(mask[None, None], s, -jnp.inf)
    p = jax.nn.softmax(s, axis=-1)
    y = jnp.einsum("bhqk,bhkd->bhqd", p, v)
    y = y.transpose(0, 2, 1, 3).reshape(B, T, C)
    return y @ params["w_proj"] + params["b_proj"]


# ----------------------------------------------------------------------------
if __name__ == "__main__":
    # T=512 with 256-wide tiles exercises the multi-block online softmax,
    # the causal DMA clamp, and both the masked (diagonal) and unmasked
    # (interior) kv-block paths.
    B, T, C, n_head = 2, 512, 128, 4

    key = jax.random.PRNGKey(0)
    kx, kw1, kb1, kw2, kb2 = jax.random.split(key, 5)

    x = jax.random.normal(kx, (B, T, C), dtype=jnp.float32)

    # Deterministic parameter init (weights stored transposed: (Cin, Cout))
    params = {
        "w_attn": 0.02 * jax.random.normal(kw1, (C, 3 * C), dtype=jnp.float32),
        "b_attn": 0.02 * jax.random.normal(kb1, (3 * C,), dtype=jnp.float32),
        "w_proj": 0.02 * jax.random.normal(kw2, (C, C), dtype=jnp.float32),
        "b_proj": 0.02 * jax.random.normal(kb2, (C,), dtype=jnp.float32),
    }

    y = causal_self_attention(x, params, n_head)
    y = jax.block_until_ready(y)

    y_ref = reference_forward(x, params, n_head)
    assert y.shape == (B, T, C)
    assert jnp.allclose(y, y_ref, rtol=1e-3, atol=1e-3), "mismatch vs reference"

    print("KERNEL_OK")
</pallas_src>

<mosaic_0001>
module attributes {stable_mosaic.version = 11 : i64} {
  func.func @_linear_kernel_f32(%arg0: i32, %arg1: i32, %arg2: i32, %arg3: memref<512x128xf32, #tpu.memory_space<vmem>>, %arg4: memref<128x384xf32, #tpu.memory_space<vmem>>, %arg5: memref<1x384xf32, #tpu.memory_space<vmem>>, %arg6: memref<512x384xf32, #tpu.memory_space<vmem>>) attributes {dimension_semantics = [#tpu.dimension_semantics<parallel>, #tpu.dimension_semantics<parallel>, #tpu.dimension_semantics<arbitrary>], iteration_bounds = array<i64: 2, 1, 1>, scalar_prefetch = 0 : i64, scratch_operands = 0 : i64, tpu.core_type = #tpu.core_type<tc>, window_params = [{transform_indices = @transform_0, window_bounds = array<i64: 512, 128>}, {transform_indices = @transform_1, window_bounds = array<i64: 128, 384>}, {transform_indices = @transform_2, window_bounds = array<i64: 1, 384>}, {transform_indices = @transform_3, window_bounds = array<i64: 512, 384>}]} {
    %c0_i32 = arith.constant 0 : i32
    %0 = arith.cmpi eq, %arg2, %c0_i32 : i32
    %1 = arith.extui %0 : i1 to i32
    %c0_i32_0 = arith.constant 0 : i32
    %2 = arith.cmpi ne, %1, %c0_i32_0 : i32
    scf.if %2 {
      %c0_8 = arith.constant 0 : index
      %c0_9 = arith.constant 0 : index
      %9 = vector.load %arg5[%c0_8, %c0_9] : memref<1x384xf32, #tpu.memory_space<vmem>>, vector<1x384xf32>
      %10 = vector.shape_cast %9 : vector<1x384xf32> to vector<1x384xf32>
      %11 = vector.broadcast %10 : vector<1x384xf32> to vector<512x384xf32>
      %c0_10 = arith.constant 0 : index
      %c0_11 = arith.constant 0 : index
      %12 = vector.load %arg6[%c0_10, %c0_11] : memref<512x384xf32, #tpu.memory_space<vmem>>, vector<512x384xf32>
      tpu.vector_store %arg6[%c0_10, %c0_11], %11 {strides = array<i32>} : memref<512x384xf32, #tpu.memory_space<vmem>>, vector<512x384xf32>,
    } else {
    }
    %c0 = arith.constant 0 : index
    %c0_1 = arith.constant 0 : index
    %3 = vector.load %arg6[%c0, %c0_1] : memref<512x384xf32, #tpu.memory_space<vmem>>, vector<512x384xf32>
    %c0_2 = arith.constant 0 : index
    %c0_3 = arith.constant 0 : index
    %4 = vector.load %arg3[%c0_2, %c0_3] : memref<512x128xf32, #tpu.memory_space<vmem>>, vector<512x128xf32>
    %c0_4 = arith.constant 0 : index
    %c0_5 = arith.constant 0 : index
    %5 = vector.load %arg4[%c0_4, %c0_5] : memref<128x384xf32, #tpu.memory_space<vmem>>, vector<128x384xf32>
    %cst = arith.constant dense<0.000000e+00> : vector<512x384xf32>
    %6 = tpu.matmul %4, %5, %cst {dimension_numbers = #tpu.dot_dimension_numbers<[1], [0], [0], [1], [0, 0, 1, 1], [], []>} : vector<512x128xf32>, vector<128x384xf32>, vector<512x384xf32> -> vector<512x384xf32>
    %7 = arith.addf %3, %6 : vector<512x384xf32>
    %c0_6 = arith.constant 0 : index
    %c0_7 = arith.constant 0 : index
    %8 = vector.load %arg6[%c0_6, %c0_7] : memref<512x384xf32, #tpu.memory_space<vmem>>, vector<512x384xf32>
    tpu.vector_store %arg6[%c0_6, %c0_7], %7 {strides = array<i32>} : memref<512x384xf32, #tpu.memory_space<vmem>>, vector<512x384xf32>,
    return
  }
  func.func @transform_0(%arg0: i32, %arg1: i32, %arg2: i32) -> (i32, i32) {
    %c0_i32 = arith.constant 0 : i32
    return %arg0, %arg2 : i32, i32
  }
  func.func @transform_1(%arg0: i32, %arg1: i32, %arg2: i32) -> (i32, i32) {
    %c0_i32 = arith.constant 0 : i32
    return %arg2, %arg1 : i32, i32
  }
  func.func @transform_2(%arg0: i32, %arg1: i32, %arg2: i32) -> (i32, i32) {
    %c0_i32 = arith.constant 0 : i32
    %c0_i32_0 = arith.constant 0 : i32
    return %c0_i32, %arg1 : i32, i32
  }
  func.func @transform_3(%arg0: i32, %arg1: i32, %arg2: i32) -> (i32, i32) {
    %c0_i32 = arith.constant 0 : i32
    return %arg0, %arg1 : i32, i32
  }
}

</mosaic_0001>

<llo_original>
// kernel: tpu_custom_call.1
$region0: #{tpu_custom_call.1}
  #allocation0 [shape = 'u32[]', space=smem, size = 0x4, offset = 0x4, fixed_abs, tag = 'smem constant byte address 0x4 - core index']
  #allocation1 [shape = 'u32[144,128]{1,0:T(1,128)}', space=vmem, size = 0x12000, scoped, tag = 'internal scratch']
  %s0 = inlined_call_operand.hbm [shape: f32[1024,128], index: 0, kind: input, shape index: {}]
  %s1 = inlined_call_operand.hbm [shape: f32[128,384], index: 1, kind: input, shape index: {}]
  %s2 = inlined_call_operand.hbm [shape: f32[1,384], index: 2, kind: input, shape index: {}]
  %s3 = inlined_call_operand.hbm [shape: f32[1024,384], index: 3, kind: output, shape index: {}]
  %s4 = sld [smem:[#allocation0]]
  $region61: #{tpu_custom_call.1} parent=0
    _
  %s6 = ssub.s32 1, %s4
  %s7 = scalar_select 0, %s6, %s4
  $region1: #{tpu_custom_call.1} parent=0
    #allocation2 [shape = 'u8[524288]{0}', space=vmem, size = 0x80000, scoped, tag = 'input window, operand 0']
    #allocation3 [shape = 's32[2]{0}', space=sflag, size = 0x8, scoped, tag = 'scoped memory for tpu_custom_call.1']
    #allocation4 [shape = 's32[2]{0}', space=sflag, size = 0x8, scoped, tag = 'scoped memory for tpu_custom_call.1']
    #allocation5 [shape = 'u8[196608]{0}', space=vmem, size = 0x30000, scoped, tag = 'input window, operand 1, single buffered']
    #allocation6 [shape = 's32[1]{0}', space=sflag, size = 0x4, scoped, tag = 'scoped memory for tpu_custom_call.1']
    #allocation7 [shape = 'u8[1536]{0}', space=vmem, size = 0x800, scoped, tag = 'input window, operand 2, single buffered']
    #allocation8 [shape = 'u8[1572864]{0}', space=vmem, size = 0x180000, scoped, tag = 'output window, operand 0']
    %8 = vsyncpa [#allocation3], 0
    %s9 = scalar_lea.sflag [#allocation3], 1
    %10 = vsyncpa %s9, 0
    %11 = vsyncpa [#allocation6], 0
    %12 = vsyncpa [#allocation4], 0
    %s13 = scalar_lea.sflag [#allocation4], 1
    %14 = vsyncpa %s13, 0
    loop: start=0, step=1, limit=4
    $region2: #{tpu_custom_call.1} parent=1 // loop_pre_header
      _
    $region3: #{tpu_custom_call.1} parent=1 // loop_header
      %s16 = sphi 0, %s20
      %p17 = scmp.ge.s32.totalorder %s16, 4
      %s23 = sphi 0, %s42
      %s24 = sphi 0, %s38
      %s25 = sphi 0, %s34
      %s26 = sphi 0, %s23
      %s27 = sphi 0, %s24
      %s28 = sphi 0, %s25
      %s29 = sphi 0, %s26
      %s30 = sphi 0, %s27
      %s31 = sphi 0, %s28
      %s47 = sphi 0, %s49
      %s50 = sphi 0, %s47
      %s51 = sphi 0, %s50
      %s67 = sphi 0, %s51
      %s75 = sphi 0, %s77
      %s78 = sphi 0, %s75
      %s79 = sphi 0, %s78
      %s95 = sphi 0, %s79
      %s101 = sphi 0, %s103
      %s104 = sphi 0, %s101
      %s105 = sphi 0, %s104
      %s121 = sphi 0, %s105
      %s129 = sphi 0, %s131
      %s132 = sphi 0, %s129
      %s133 = sphi 0, %s132
      %s149 = sphi 0, %s133
    $region4: #{tpu_custom_call.1} parent=1 // loop_header_branch
      %19 = sbr.rel (%p17) target = $region8
    $region5: #{tpu_custom_call.1} parent=1 // loop_body
      %s21 = ssub.s32 %s16, 1
      %s22 = ssub.s32 %s16, 2
      %s32 = sadd.s32 1, %s25
      %p33 = scmp.ge.s32.totalorder %s32, 1
      %s34 = scalar_select %p33, 0, %s32
      %s35 = sadd.s32 1, %s24
      %s36 = scalar_select %p33, %s35, %s24
      %p37 = scmp.ge.s32.totalorder %s36, 1
      %s38 = scalar_select %p37, 0, %s36
      %s39 = sadd.s32 1, %s23
      %s40 = scalar_select %p37, %s39, %s23
      %p41 = scmp.ge.s32.totalorder %s40, 2
      %s42 = scalar_select %p41, 0, %s40
      %s43 = ssub.s32 %s23, %s42
      %s44 = ssub.s32 %s25, %s34
      %s45 = sor.u32 %s43, %s44
      %p46 = scmp.eq.s32.totalorder %s45, 0
      %s48 = sadd.s32 %s47, 1
      %s49 = scalar_select %p46, %s47, %s48
      %p52 = pneg %p46
      %p53 = scmp.eq.s32.totalorder %s16, 1
      %p54 = por %p52, %p53
      %p55 = scmp.ne.s32.totalorder %s47, %s50
      %p56 = scmp.eq.s32.totalorder %s16, 0
      %p57 = por %p55, %p56
      %p58 = scmp.ne.s32.totalorder %s47, %s50
      %p59 = scmp.eq.s32.totalorder %s21, 1
      %p60 = por %p58, %p59
      %p61 = scmp.ne.s32.totalorder %s50, %s51
      %p62 = scmp.eq.s32.totalorder %s21, 0
      %p63 = por %p61, %p62
      %p64 = scmp.ne.s32.totalorder %s50, %s51
      %p65 = scmp.eq.s32.totalorder %s22, 1
      %p66 = por %p64, %p65
      %p68 = scmp.ne.s32.totalorder %s51, %s67
      %p69 = scmp.eq.s32.totalorder %s22, 0
      %p70 = por %p68, %p69
      %s71 = ssub.s32 %s25, %s34
      %s72 = ssub.s32 %s24, %s38
      %s73 = sor.u32 %s71, %s72
      %p74 = scmp.eq.s32.totalorder %s73, 0
      %s76 = sadd.s32 %s75, 1
      %s77 = scalar_select %p74, %s75, %s76
      %p80 = pneg %p74
      %p81 = scmp.eq.s32.totalorder %s16, 1
      %p82 = por %p80, %p81
      %p83 = scmp.ne.s32.totalorder %s75, %s78
      %p84 = scmp.eq.s32.totalorder %s16, 0
      %p85 = por %p83, %p84
      %p86 = scmp.ne.s32.totalorder %s75, %s78
      %p87 = scmp.eq.s32.totalorder %s21, 1
      %p88 = por %p86, %p87
      %p89 = scmp.ne.s32.totalorder %s78, %s79
      %p90 = scmp.eq.s32.totalorder %s21, 0
      %p91 = por %p89, %p90
      %p92 = scmp.ne.s32.totalorder %s78, %s79
      %p93 = scmp.eq.s32.totalorder %s22, 1
      %p94 = por %p92, %p93
      %p96 = scmp.ne.s32.totalorder %s79, %s95
      %p97 = scmp.eq.s32.totalorder %s22, 0
      %p98 = por %p96, %p97
      %s99 = ssub.s32 %s24, %s38
      %p100 = scmp.eq.s32.totalorder %s99, 0
      %s102 = sadd.s32 %s101, 1
      %s103 = scalar_select %p100, %s101, %s102
      %p106 = pneg %p100
      %p107 = scmp.eq.s32.totalorder %s16, 1
      %p108 = por %p106, %p107
      %p109 = scmp.ne.s32.totalorder %s101, %s104
      %p110 = scmp.eq.s32.totalorder %s16, 0
      %p111 = por %p109, %p110
      %p112 = scmp.ne.s32.totalorder %s101, %s104
      %p113 = scmp.eq.s32.totalorder %s21, 1
      %p114 = por %p112, %p113
      %p115 = scmp.ne.s32.totalorder %s104, %s105
      %p116 = scmp.eq.s32.totalorder %s21, 0
      %p117 = por %p115, %p116
      %p118 = scmp.ne.s32.totalorder %s104, %s105
      %p119 = scmp.eq.s32.totalorder %s22, 1
      %p120 = por %p118, %p119
      %p122 = scmp.ne.s32.totalorder %s105, %s121
      %p123 = scmp.eq.s32.totalorder %s22, 0
      %p124 = por %p122, %p123
      %s125 = ssub.s32 %s23, %s42
      %s126 = ssub.s32 %s24, %s38
      %s127 = sor.u32 %s125, %s126
      %p128 = scmp.eq.s32.totalorder %s127, 0
      %s130 = sadd.s32 %s129, 1
      %s131 = scalar_select %p128, %s129, %s130
      %p134 = pneg %p128
      %p135 = scmp.eq.s32.totalorder %s16, 1
      %p136 = por %p134, %p135
      %p137 = scmp.ne.s32.totalorder %s129, %s132
      %p138 = scmp.eq.s32.totalorder %s16, 0
      %p139 = por %p137, %p138
      %p140 = scmp.ne.s32.totalorder %s129, %s132
      %p141 = scmp.eq.s32.totalorder %s21, 1
      %p142 = por %p140, %p141
      %p143 = scmp.ne.s32.totalorder %s132, %s133
      %p144 = scmp.eq.s32.totalorder %s21, 0
      %p145 = por %p143, %p144
      %p146 = scmp.ne.s32.totalorder %s132, %s133
      %p147 = scmp.eq.s32.totalorder %s22, 1
      %p148 = por %p146, %p147
      %p150 = scmp.ne.s32.totalorder %s133, %s149
      %p151 = scmp.eq.s32.totalorder %s22, 0
      %p152 = por %p150, %p151
      %p153 = scmp.le.s32.totalorder 1, %s16
      %p154 = scmp.lt.s32.totalorder %s16, 3
      %p155 = pnand %p153, %p154
      %p156 = pneg %p155
      // Predicated region
      $region9: #{tpu_custom_call.1} parent=5 // pred_check
        _
      $region10: #{tpu_custom_call.1} parent=5 // pred_check_branch
        %158 = sbr.rel (%p155) target = $region12
      $region11: #{tpu_custom_call.1} parent=5 // pred_region
        %s159 = ssub.s32 %s16, 1
        // Predicated region
        $region13: #{tpu_custom_call.1} parent=11 // pred_check
          %p160 = pneg %p91
        $region14: #{tpu_custom_call.1} parent=11 // pred_check_branch
          %162 = sbr.rel (%p160) target = $region16
        $region15: #{tpu_custom_call.1} parent=11 // pred_region
          %s163 = smul.u32 16, %s28
          %s164 = smul.u32 3, %s27
          %s166 = ssub.s32 6144, 6144
          %167 = vsyncadd [#allocation6], %s166
          %s168 = smul.addr %s163, 3
          %s169 = sadd.s32 %s164, %s168
          %s170 = smul.addr %s169, 128
          %s171 = scalar_lea.hbm %s1, %s170
          %s172 = sshll.u32 [#allocation5], 4
          %s173 = int_to_ptr.vmem [resolvable:$true] %s172
          %178 = dma.hbm_to_vmem [thread:$0]  %s171, 6144, %s173, [#allocation6], 384, 384, 24
        $region16: #{tpu_custom_call.1} parent=11 // pred_fallthru
          _
        // Predicated region
        $region17: #{tpu_custom_call.1} parent=11 // pred_check
          %p179 = pneg %p117
        $region18: #{tpu_custom_call.1} parent=11 // pred_check_branch
          %181 = sbr.rel (%p179) target = $region20
        $region19: #{tpu_custom_call.1} parent=11 // pred_region
          %s182 = smul.u32 3, %s27
          %s184 = ssub.s32 48, 48
          %185 = vsyncadd [#allocation6], %s184
          %s186 = smul.addr %s182, 16
          %s187 = scalar_lea.hbm %s2, %s186
          %s189 = sshll.u32 [#allocation7], 4
          %s190 = int_to_ptr.vmem [resolvable:$true] %s189
          %192 = dma.hbm_to_vmem [thread:$0]  %s187, 48, %s190, [#allocation6]
        $region20: #{tpu_custom_call.1} parent=11 // pred_fallthru
          _
      $region12: #{tpu_custom_call.1} parent=5 // pred_fallthru
        _
      %p193 = scmp.lt.s32.totalorder %s16, 2
      // Predicated region
      $region21: #{tpu_custom_call.1} parent=5 // pred_check
        %p194 = pneg %p193
      $region22: #{tpu_custom_call.1} parent=5 // pred_check_branch
        %196 = sbr.rel (%p194) target = $region24
      $region23: #{tpu_custom_call.1} parent=5 // pred_region
        // Predicated region
        $region25: #{tpu_custom_call.1} parent=23 // pred_check
          %p197 = pneg %p57
        $region26: #{tpu_custom_call.1} parent=23 // pred_check_branch
          %199 = sbr.rel (%p197) target = $region28
        $region27: #{tpu_custom_call.1} parent=23 // pred_region
          %s200 = sand.u32 %s47, 1
          %s201 = scalar_lea.sflag [#allocation3], %s200
          %s202 = sand.u32 %s47, 1
          %s203 = smul.addr %s202, 512
          %s204 = scalar_lea.vmem [#allocation2], %s203
          %s205 = smul.u32 64, %s23
          %s207 = ssub.s32 8192, 8192
          %208 = vsyncadd %s201, %s207
          %s209 = sadd.s32 %s25, %s205
          %s210 = smul.addr %s209, 128
          %s211 = scalar_lea.hbm %s0, %s210
          %s212 = sshll.u32 %s204, 4
          %s213 = int_to_ptr.vmem [resolvable:$true] %s212
          %218 = dma.hbm_to_vmem [thread:$0]  %s211, 8192, %s213, %s201, 128, 128, 8
        $region28: #{tpu_custom_call.1} parent=23 // pred_fallthru
          _
      $region24: #{tpu_custom_call.1} parent=5 // pred_fallthru
        _
      %p219 = scmp.le.s32.totalorder 1, %s16
      %p220 = scmp.lt.s32.totalorder %s16, 3
      %p221 = pnand %p219, %p220
      %p222 = pneg %p221
      // Predicated region
      $region29: #{tpu_custom_call.1} parent=5 // pred_check
        _
      $region30: #{tpu_custom_call.1} parent=5 // pred_check_branch
        %224 = sbr.rel (%p221) target = $region32
      $region31: #{tpu_custom_call.1} parent=5 // pred_region
        %s225 = ssub.s32 %s16, 1
        %s226 = sand.u32 %s50, 1
        %s227 = scalar_lea.sflag [#allocation3], %s226
        %s228 = sand.u32 %s50, 1
        %s229 = smul.addr %s228, 512
        %s230 = scalar_lea.vmem [#allocation2], %s229
        // Predicated region
        $region33: #{tpu_custom_call.1} parent=31 // pred_check
          %p231 = pneg %p63
        $region34: #{tpu_custom_call.1} parent=31 // pred_check_branch
          %233 = sbr.rel (%p231) target = $region36
        $region35: #{tpu_custom_call.1} parent=31 // pred_region
          %234 = dma.done %s227, 8192
        $region36: #{tpu_custom_call.1} parent=31 // pred_fallthru
          _
        // Predicated region
        $region37: #{tpu_custom_call.1} parent=31 // pred_check
          %p235 = pneg %p91
        $region38: #{tpu_custom_call.1} parent=31 // pred_check_branch
          %237 = sbr.rel (%p235) target = $region40
        $region39: #{tpu_custom_call.1} parent=31 // pred_region
          %238 = dma.done [#allocation6], 6144
        $region40: #{tpu_custom_call.1} parent=31 // pred_fallthru
          _
        // Predicated region
        $region41: #{tpu_custom_call.1} parent=31 // pred_check
          %p239 = pneg %p117
        $region42: #{tpu_custom_call.1} parent=31 // pred_check_branch
          %241 = sbr.rel (%p239) target = $region44
        $region43: #{tpu_custom_call.1} parent=31 // pred_region
          %242 = dma.done [#allocation6], 48
        $region44: #{tpu_custom_call.1} parent=31 // pred_fallthru
          _
        %s243 = sand.u32 %s50, 1
        %s244 = scalar_lea.sflag [#allocation3], %s243
        %s245 = sand.u32 %s50, 1
        %s246 = smul.addr %s245, 512
        %s247 = scalar_lea.vmem [#allocation2], %s246
        %p248 = pneg %p63
        %p249 = pneg %p60
        %p250 = pneg %p91
        %p251 = pneg %p88
        %p252 = pneg %p117
        %p253 = pneg %p114
        %p254 = pneg %p145
        %p255 = pneg %p142
        %s256 = sand.u32 %s132, 1
        %s257 = scalar_lea.sflag [#allocation4], %s256
        %s258 = sand.u32 %s132, 1
        %s259 = smul.addr %s258, 1536
        %s260 = scalar_lea.vmem [#allocation8], %s259
        %s261 = smul.u32 64, %s26
        %s262 = smul.u32 16, %s28
        %s263 = smul.u32 3, %s27
        %s264 = smul.u32 3, %s27
        %s265 = smul.u32 64, %s26
        %s266 = smul.u32 3, %s27
        %p267 = scmp.eq.s32.totalorder %s28, 0
        // Predicated region
        $region45: #{tpu_custom_call.1} parent=31 // pred_check
          %p268 = pneg %p267
        $region46: #{tpu_custom_call.1} parent=31 // pred_check_branch
          %270 = sbr.rel (%p268) target = $region48
        $region47: #{tpu_custom_call.1} parent=31 // pred_region
          %v271 = vld [vmem:[#allocation7] sm:$0x7]
          %v273 = vlaneseq
          %v274 = vshrl.u32 %v273, 7
          %v275 = vsub.s32 0, %v274
          %v276 = vrot.slane %v271, %v275
          %v277 = vlaneseq
          %v278 = vshrl.u32 %v277, 7
          %v279 = vsub.s32 1, %v278
          %v280 = vrot.slane %v271, %v279
          %v281 = vlaneseq
          %v282 = vshrl.u32 %v281, 7
          %v283 = vsub.s32 2, %v282
          %v284 = vrot.slane %v271, %v283
          %288 = vst [vmem:[%s260] sm:$0xff] %v276
          %289 = vst [vmem:[%s260 + $0x8] sm:$0xff] %v280
          %290 = vst [vmem:[%s260 + $0x10] sm:$0xff] %v284
          %291 = vst [vmem:[%s260 + $0x18] sm:$0xff] %v276
          %292 = vst [vmem:[%s260 + $0x20] sm:$0xff] %v280
          %293 = vst [vmem:[%s260 + $0x28] sm:$0xff] %v284
          %294 = vst [vmem:[%s260 + $0x30] sm:$0xff] %v276
          %295 = vst [vmem:[%s260 + $0x38] sm:$0xff] %v280
          %296 = vst [vmem:[%s260 + $0x40] sm:$0xff] %v284
          %297 = vst [vmem:[%s260 + $0x48] sm:$0xff] %v276
          %298 = vst [vmem:[%s260 + $0x50] sm:$0xff] %v280
          %299 = vst [vmem:[%s260 + $0x58] sm:$0xff] %v284
          %300 = vst [vmem:[%s260 + $0x60] sm:$0xff] %v276
          %301 = vst [vmem:[%s260 + $0x68] sm:$0xff] %v280
          %302 = vst [vmem:[%s260 + $0x70] sm:$0xff] %v284
          %303 = vst [vmem:[%s260 + $0x78] sm:$0xff] %v276
          %304 = vst [vmem:[%s260 + $0x80] sm:$0xff] %v280
          %305 = vst [vmem:[%s260 + $0x88] sm:$0xff] %v284
          %306 = vst [vmem:[%s260 + $0x90] sm:$0xff] %v276
          %307 = vst [vmem:[%s260 + $0x98] sm:$0xff] %v280
          %308 = vst [vmem:[%s260 + $0xa0] sm:$0xff] %v284
          %309 = vst [vmem:[%s260 + $0xa8] sm:$0xff] %v276
          %310 = vst [vmem:[%s260 + $0xb0] sm:$0xff] %v280
          %311 = vst [vmem:[%s260 + $0xb8] sm:$0xff] %v284
          %312 = vst [vmem:[%s260 + $0xc0] sm:$0xff] %v276
          %313 = vst [vmem:[%s260 + $0xc8] sm:$0xff] %v280
          %314 = vst [vmem:[%s260 + $0xd0] sm:$0xff] %v284
          %315 = vst [vmem:[%s260 + $0xd8] sm:$0xff] %v276
          %316 = vst [vmem:[%s260 + $0xe0] sm:$0xff] %v280
          %317 = vst [vmem:[%s260 + $0xe8] sm:$0xff] %v284
          %318 = vst [vmem:[%s260 + $0xf0] sm:$0xff] %v276
          %319 = vst [vmem:[%s260 + $0xf8] sm:$0xff] %v280
          %320 = vst [vmem:[%s260 + $0x100] sm:$0xff] %v284
          %321 = vst [vmem:[%s260 + $0x108] sm:$0xff] %v276
          %322 = vst [vmem:[%s260 + $0x110] sm:$0xff] %v280
          %323 = vst [vmem:[%s260 + $0x118] sm:$0xff] %v284
          %324 = vst [vmem:[%s260 + $0x120] sm:$0xff] %v276
          %325 = vst [vmem:[%s260 + $0x128] sm:$0xff] %v280
          %326 = vst [vmem:[%s260 + $0x130] sm:$0xff] %v284
          %327 = vst [vmem:[%s260 + $0x138] sm:$0xff] %v276
          %328 = vst [vmem:[%s260 + $0x140] sm:$0xff] %v280
          %329 = vst [vmem:[%s260 + $0x148] sm:$0xff] %v284
          %330 = vst [vmem:[%s260 + $0x150] sm:$0xff] %v276
          %331 = vst [vmem:[%s260 + $0x158] sm:$0xff] %v280
          %332 = vst [vmem:[%s260 + $0x160] sm:$0xff] %v284
          %333 = vst [vmem:[%s260 + $0x168] sm:$0xff] %v276
          %334 = vst [vmem:[%s260 + $0x170] sm:$0xff] %v280
          %335 = vst [vmem:[%s260 + $0x178] sm:$0xff] %v284
          %336 = vst [vmem:[%s260 + $0x180] sm:$0xff] %v276
          %337 = vst [vmem:[%s260 + $0x188] sm:$0xff] %v280
          %338 = vst [vmem:[%s260 + $0x190] sm:$0xff] %v284
          %339 = vst [vmem:[%s260 + $0x198] sm:$0xff] %v276
          %340 = vst [vmem:[%s260 + $0x1a0] sm:$0xff] %v280
          %341 = vst [vmem:[%s260 + $0x1a8] sm:$0xff] %v284
          %342 = vst [vmem:[%s260 + $0x1b0] sm:$0xff] %v276
          %343 = vst [vmem:[%s260 + $0x1b8] sm:$0xff] %v280
          %344 = vst [vmem:[%s260 + $0x1c0] sm:$0xff] %v284
          %345 = vst [vmem:[%s260 + $0x1c8] sm:$0xff] %v276
          %346 = vst [vmem:[%s260 + $0x1d0] sm:$0xff] %v280
          %347 = vst [vmem:[%s260 + $0x1d8] sm:$0xff] %v284
          %348 = vst [vmem:[%s260 + $0x1e0] sm:$0xff] %v276
          %349 = vst [vmem:[%s260 + $0x1e8] sm:$0xff] %v280
          %350 = vst [vmem:[%s260 + $0x1f0] sm:$0xff] %v284
          %351 = vst [vmem:[%s260 + $0x1f8] sm:$0xff] %v276
          %352 = vst [vmem:[%s260 + $0x200] sm:$0xff] %v280
          %353 = vst [vmem:[%s260 + $0x208] sm:$0xff] %v284
          %354 = vst [vmem:[%s260 + $0x210] sm:$0xff] %v276
          %355 = vst [vmem:[%s260 + $0x218] sm:$0xff] %v280
          %356 = vst [vmem:[%s260 + $0x220] sm:$0xff] %v284
          %357 = vst [vmem:[%s260 + $0x228] sm:$0xff] %v276
          %358 = vst [vmem:[%s260 + $0x230] sm:$0xff] %v280
          %359 = vst [vmem:[%s260 + $0x238] sm:$0xff] %v284
          %360 = vst [vmem:[%s260 + $0x240] sm:$0xff] %v276
          %361 = vst [vmem:[%s260 + $0x248] sm:$0xff] %v280
          %362 = vst [vmem:[%s260 + $0x250] sm:$0xff] %v284
          %363 = vst [vmem:[%s260 + $0x258] sm:$0xff] %v276
          %364 = vst [vmem:[%s260 + $0x260] sm:$0xff] %v280
          %365 = vst [vmem:[%s260 + $0x268] sm:$0xff] %v284
          %366 = vst [vmem:[%s260 + $0x270] sm:$0xff] %v276
          %367 = vst [vmem:[%s260 + $0x278] sm:$0xff] %v280
          %368 = vst [vmem:[%s260 + $0x280] sm:$0xff] %v284
          %369 = vst [vmem:[%s260 + $0x288] sm:$0xff] %v276
          %370 = vst [vmem:[%s260 + $0x290] sm:$0xff] %v280
          %371 = vst [vmem:[%s260 + $0x298] sm:$0xff] %v284
          %372 = vst [vmem:[%s260 + $0x2a0] sm:$0xff] %v276
          %373 = vst [vmem:[%s260 + $0x2a8] sm:$0xff] %v280
          %374 = vst [vmem:[%s260 + $0x2b0] sm:$0xff] %v284
          %375 = vst [vmem:[%s260 + $0x2b8] sm:$0xff] %v276
          %376 = vst [vmem:[%s260 + $0x2c0] sm:$0xff] %v280
          %377 = vst [vmem:[%s260 + $0x2c8] sm:$0xff] %v284
          %378 = vst [vmem:[%s260 + $0x2d0] sm:$0xff] %v276
          %379 = vst [vmem:[%s260 + $0x2d8] sm:$0xff] %v280
          %380 = vst [vmem:[%s260 + $0x2e0] sm:$0xff] %v284
          %381 = vst [vmem:[%s260 + $0x2e8] sm:$0xff] %v276
          %382 = vst [vmem:[%s260 + $0x2f0] sm:$0xff] %v280
          %383 = vst [vmem:[%s260 + $0x2f8] sm:$0xff] %v284
          %384 = vst [vmem:[%s260 + $0x300] sm:$0xff] %v276
          %385 = vst [vmem:[%s260 + $0x308] sm:$0xff] %v280
          %386 = vst [vmem:[%s260 + $0x310] sm:$0xff] %v284
          %387 = vst [vmem:[%s260 + $0x318] sm:$0xff] %v276
          %388 = vst [vmem:[%s260 + $0x320] sm:$0xff] %v280
          %389 = vst [vmem:[%s260 + $0x328] sm:$0xff] %v284
          %390 = vst [vmem:[%s260 + $0x330] sm:$0xff] %v276
          %391 = vst [vmem:[%s260 + $0x338] sm:$0xff] %v280
          %392 = vst [vmem:[%s260 + $0x340] sm:$0xff] %v284
          %393 = vst [vmem:[%s260 + $0x348] sm:$0xff] %v276
          %394 = vst [vmem:[%s260 + $0x350] sm:$0xff] %v280
          %395 = vst [vmem:[%s260 + $0x358] sm:$0xff] %v284
          %396 = vst [vmem:[%s260 + $0x360] sm:$0xff] %v276
          %397 = vst [vmem:[%s260 + $0x368] sm:$0xff] %v280
          %398 = vst [vmem:[%s260 + $0x370] sm:$0xff] %v284
          %399 = vst [vmem:[%s260 + $0x378] sm:$0xff] %v276
          %400 = vst [vmem:[%s260 + $0x380] sm:$0xff] %v280
          %401 = vst [vmem:[%s260 + $0x388] sm:$0xff] %v284
          %402 = vst [vmem:[%s260 + $0x390] sm:$0xff] %v276
          %403 = vst [vmem:[%s260 + $0x398] sm:$0xff] %v280
          %404 = vst [vmem:[%s260 + $0x3a0] sm:$0xff] %v284
          %405 = vst [vmem:[%s260 + $0x3a8] sm:$0xff] %v276
          %406 = vst [vmem:[%s260 + $0x3b0] sm:$0xff] %v280
          %407 = vst [vmem:[%s260 + $0x3b8] sm:$0xff] %v284
          %408 = vst [vmem:[%s260 + $0x3c0] sm:$0xff] %v276
          %409 = vst [vmem:[%s260 + $0x3c8] sm:$0xff] %v280
          %410 = vst [vmem:[%s260 + $0x3d0] sm:$0xff] %v284
          %411 = vst [vmem:[%s260 + $0x3d8] sm:$0xff] %v276
          %412 = vst [vmem:[%s260 + $0x3e0] sm:$0xff] %v280
          %413 = vst [vmem:[%s260 + $0x3e8] sm:$0xff] %v284
          %414 = vst [vmem:[%s260 + $0x3f0] sm:$0xff] %v276
          %415 = vst [vmem:[%s260 + $0x3f8] sm:$0xff] %v280
          %416 = vst [vmem:[%s260 + $0x400] sm:$0xff] %v284
          %417 = vst [vmem:[%s260 + $0x408] sm:$0xff] %v276
          %418 = vst [vmem:[%s260 + $0x410] sm:$0xff] %v280
          %419 = vst [vmem:[%s260 + $0x418] sm:$0xff] %v284
          %420 = vst [vmem:[%s260 + $0x420] sm:$0xff] %v276
          %421 = vst [vmem:[%s260 + $0x428] sm:$0xff] %v280
          %422 = vst [vmem:[%s260 + $0x430] sm:$0xff] %v284
          %423 = vst [vmem:[%s260 + $0x438] sm:$0xff] %v276
          %424 = vst [vmem:[%s260 + $0x440] sm:$0xff] %v280
          %425 = vst [vmem:[%s260 + $0x448] sm:$0xff] %v284
          %426 = vst [vmem:[%s260 + $0x450] sm:$0xff] %v276
          %427 = vst [vmem:[%s260 + $0x458] sm:$0xff] %v280
          %428 = vst [vmem:[%s260 + $0x460] sm:$0xff] %v284
          %429 = vst [vmem:[%s260 + $0x468] sm:$0xff] %v276
          %430 = vst [vmem:[%s260 + $0x470] sm:$0xff] %v280
          %431 = vst [vmem:[%s260 + $0x478] sm:$0xff] %v284
          %432 = vst [vmem:[%s260 + $0x480] sm:$0xff] %v276
          %433 = vst [vmem:[%s260 + $0x488] sm:$0xff] %v280
          %434 = vst [vmem:[%s260 + $0x490] sm:$0xff] %v284
          %435 = vst [vmem:[%s260 + $0x498] sm:$0xff] %v276
          %436 = vst [vmem:[%s260 + $0x4a0] sm:$0xff] %v280
          %437 = vst [vmem:[%s260 + $0x4a8] sm:$0xff] %v284
          %438 = vst [vmem:[%s260 + $0x4b0] sm:$0xff] %v276
          %439 = vst [vmem:[%s260 + $0x4b8] sm:$0xff] %v280
          %440 = vst [vmem:[%s260 + $0x4c0] sm:$0xff] %v284
          %441 = vst [vmem:[%s260 + $0x4c8] sm:$0xff] %v276
          %442 = vst [vmem:[%s260 + $0x4d0] sm:$0xff] %v280
          %443 = vst [vmem:[%s260 + $0x4d8] sm:$0xff] %v284
          %444 = vst [vmem:[%s260 + $0x4e0] sm:$0xff] %v276
          %445 = vst [vmem:[%s260 + $0x4e8] sm:$0xff] %v280
          %446 = vst [vmem:[%s260 + $0x4f0] sm:$0xff] %v284
          %447 = vst [vmem:[%s260 + $0x4f8] sm:$0xff] %v276
          %448 = vst [vmem:[%s260 + $0x500] sm:$0xff] %v280
          %449 = vst [vmem:[%s260 + $0x508] sm:$0xff] %v284
          %450 = vst [vmem:[%s260 + $0x510] sm:$0xff] %v276
          %451 = vst [vmem:[%s260 + $0x518] sm:$0xff] %v280
          %452 = vst [vmem:[%s260 + $0x520] sm:$0xff] %v284
          %453 = vst [vmem:[%s260 + $0x528] sm:$0xff] %v276
          %454 = vst [vmem:[%s260 + $0x530] sm:$0xff] %v280
          %455 = vst [vmem:[%s260 + $0x538] sm:$0xff] %v284
          %456 = vst [vmem:[%s260 + $0x540] sm:$0xff] %v276
          %457 = vst [vmem:[%s260 + $0x548] sm:$0xff] %v280
          %458 = vst [vmem:[%s260 + $0x550] sm:$0xff] %v284
          %459 = vst [vmem:[%s260 + $0x558] sm:$0xff] %v276
          %460 = vst [vmem:[%s260 + $0x560] sm:$0xff] %v280
          %461 = vst [vmem:[%s260 + $0x568] sm:$0xff] %v284
          %462 = vst [vmem:[%s260 + $0x570] sm:$0xff] %v276
          %463 = vst [vmem:[%s260 + $0x578] sm:$0xff] %v280
          %464 = vst [vmem:[%s260 + $0x580] sm:$0xff] %v284
          %465 = vst [vmem:[%s260 + $0x588] sm:$0xff] %v276
          %466 = vst [vmem:[%s260 + $0x590] sm:$0xff] %v280
          %467 = vst [vmem:[%s260 + $0x598] sm:$0xff] %v284
          %468 = vst [vmem:[%s260 + $0x5a0] sm:$0xff] %v276
          %469 = vst [vmem:[%s260 + $0x5a8] sm:$0xff] %v280
          %470 = vst [vmem:[%s260 + $0x5b0] sm:$0xff] %v284
          %471 = vst [vmem:[%s260 + $0x5b8] sm:$0xff] %v276
          %472 = vst [vmem:[%s260 + $0x5c0] sm:$0xff] %v280
          %473 = vst [vmem:[%s260 + $0x5c8] sm:$0xff] %v284
          %474 = vst [vmem:[%s260 + $0x5d0] sm:$0xff] %v276
          %475 = vst [vmem:[%s260 + $0x5d8] sm:$0xff] %v280
          %476 = vst [vmem:[%s260 + $0x5e0] sm:$0xff] %v284
          %477 = vst [vmem:[%s260 + $0x5e8] sm:$0xff] %v276
          %478 = vst [vmem:[%s260 + $0x5f0] sm:$0xff] %v280
          %479 = vst [vmem:[%s260 + $0x5f8] sm:$0xff] %v284
        $region48: #{tpu_custom_call.1} parent=31 // pred_fallthru
          _
        %v480 = vld [vmem:[%s260] sm:$0xff]
        %v481 = vld [vmem:[%s260 + $0x8] sm:$0xff]
        %v482 = vld [vmem:[%s260 + $0x10] sm:$0xff]
        %v483 = vld [vmem:[%s260 + $0x18] sm:$0xff]
        %v484 = vld [vmem:[%s260 + $0x20] sm:$0xff]
        %v485 = vld [vmem:[%s260 + $0x28] sm:$0xff]
        %v486 = vld [vmem:[%s260 + $0x30] sm:$0xff]
        %v487 = vld [vmem:[%s260 + $0x38] sm:$0xff]
        %v488 = vld [vmem:[%s260 + $0x40] sm:$0xff]
        %v489 = vld [vmem:[%s260 + $0x48] sm:$0xff]
        %v490 = vld [vmem:[%s260 + $0x50] sm:$0xff]
        %v491 = vld [vmem:[%s260 + $0x58] sm:$0xff]
        %v492 = vld [vmem:[%s260 + $0x60] sm:$0xff]
        %v493 = vld [vmem:[%s260 + $0x68] sm:$0xff]
        %v494 = vld [vmem:[%s260 + $0x70] sm:$0xff]
        %v495 = vld [vmem:[%s260 + $0x78] sm:$0xff]
        %v496 = vld [vmem:[%s260 + $0x80] sm:$0xff]
        %v497 = vld [vmem:[%s260 + $0x88] sm:$0xff]
        %v498 = vld [vmem:[%s260 + $0x90] sm:$0xff]
        %v499 = vld [vmem:[%s260 + $0x98] sm:$0xff]
        %v500 = vld [vmem:[%s260 + $0xa0] sm:$0xff]
        %v501 = vld [vmem:[%s260 + $0xa8] sm:$0xff]
        %v502 = vld [vmem:[%s260 + $0xb0] sm:$0xff]
        %v503 = vld [vmem:[%s260 + $0xb8] sm:$0xff]
        %v504 = vld [vmem:[%s260 + $0xc0] sm:$0xff]
        %v505 = vld [vmem:[%s260 + $0xc8] sm:$0xff]
        %v506 = vld [vmem:[%s260 + $0xd0] sm:$0xff]
        %v507 = vld [vmem:[%s260 + $0xd8] sm:$0xff]
        %v508 = vld [vmem:[%s260 + $0xe0] sm:$0xff]
        %v509 = vld [vmem:[%s260 + $0xe8] sm:$0xff]
        %v510 = vld [vmem:[%s260 + $0xf0] sm:$0xff]
        %v511 = vld [vmem:[%s260 + $0xf8] sm:$0xff]
        %v512 = vld [vmem:[%s260 + $0x100] sm:$0xff]
        %v513 = vld [vmem:[%s260 + $0x108] sm:$0xff]
        %v514 = vld [vmem:[%s260 + $0x110] sm:$0xff]
        %v515 = vld [vmem:[%s260 + $0x118] sm:$0xff]
        %v516 = vld [vmem:[%s260 + $0x120] sm:$0xff]
        %v517 = vld [vmem:[%s260 + $0x128] sm:$0xff]
        %v518 = vld [vmem:[%s260 + $0x130] sm:$0xff]
        %v519 = vld [vmem:[%s260 + $0x138] sm:$0xff]
        %v520 = vld [vmem:[%s260 + $0x140] sm:$0xff]
        %v521 = vld [vmem:[%s260 + $0x148] sm:$0xff]
        %v522 = vld [vmem:[%s260 + $0x150] sm:$0xff]
        %v523 = vld [vmem:[%s260 + $0x158] sm:$0xff]
        %v524 = vld [vmem:[%s260 + $0x160] sm:$0xff]
        %v525 = vld [vmem:[%s260 + $0x168] sm:$0xff]
        %v526 = vld [vmem:[%s260 + $0x170] sm:$0xff]
        %v527 = vld [vmem:[%s260 + $0x178] sm:$0xff]
        %v528 = vld [vmem:[%s260 + $0x180] sm:$0xff]
        %v529 = vld [vmem:[%s260 + $0x188] sm:$0xff]
        %v530 = vld [vmem:[%s260 + $0x190] sm:$0xff]
        %v531 = vld [vmem:[%s260 + $0x198] sm:$0xff]
        %v532 = vld [vmem:[%s260 + $0x1a0] sm:$0xff]
        %v533 = vld [vmem:[%s260 + $0x1a8] sm:$0xff]
        %v534 = vld [vmem:[%s260 + $0x1b0] sm:$0xff]
        %v535 = vld [vmem:[%s260 + $0x1b8] sm:$0xff]
        %v536 = vld [vmem:[%s260 + $0x1c0] sm:$0xff]
        %v537 = vld [vmem:[%s260 + $0x1c8] sm:$0xff]
        %v538 = vld [vmem:[%s260 + $0x1d0] sm:$0xff]
        %v539 = vld [vmem:[%s260 + $0x1d8] sm:$0xff]
        %v540 = vld [vmem:[%s260 + $0x1e0] sm:$0xff]
        %v541 = vld [vmem:[%s260 + $0x1e8] sm:$0xff]
        %v542 = vld [vmem:[%s260 + $0x1f0] sm:$0xff]
        %v543 = vld [vmem:[%s260 + $0x1f8] sm:$0xff]
        %v544 = vld [vmem:[%s260 + $0x200] sm:$0xff]
        %v545 = vld [vmem:[%s260 + $0x208] sm:$0xff]
        %v546 = vld [vmem:[%s260 + $0x210] sm:$0xff]
        %v547 = vld [vmem:[%s260 + $0x218] sm:$0xff]
        %v548 = vld [vmem:[%s260 + $0x220] sm:$0xff]
        %v549 = vld [vmem:[%s260 + $0x228] sm:$0xff]
        %v550 = vld [vmem:[%s260 + $0x230] sm:$0xff]
        %v551 = vld [vmem:[%s260 + $0x238] sm:$0xff]
        %v552 = vld [vmem:[%s260 + $0x240] sm:$0xff]
        %v553 = vld [vmem:[%s260 + $0x248] sm:$0xff]
        %v554 = vld [vmem:[%s260 + $0x250] sm:$0xff]
        %v555 = vld [vmem:[%s260 + $0x258] sm:$0xff]
        %v556 = vld [vmem:[%s260 + $0x260] sm:$0xff]
        %v557 = vld [vmem:[%s260 + $0x268] sm:$0xff]
        %v558 = vld [vmem:[%s260 + $0x270] sm:$0xff]
        %v559 = vld [vmem:[%s260 + $0x278] sm:$0xff]
        %v560 = vld [vmem:[%s260 + $0x280] sm:$0xff]
        %v561 = vld [vmem:[%s260 + $0x288] sm:$0xff]
        %v562 = vld [vmem:[%s260 + $0x290] sm:$0xff]
        %v563 = vld [vmem:[%s260 + $0x298] sm:$0xff]
        %v564 = vld [vmem:[%s260 + $0x2a0] sm:$0xff]
        %v565 = vld [vmem:[%s260 + $0x2a8] sm:$0xff]
        %v566 = vld [vmem:[%s260 + $0x2b0] sm:$0xff]
        %v567 = vld [vmem:[%s260 + $0x2b8] sm:$0xff]
        %v568 = vld [vmem:[%s260 + $0x2c0] sm:$0xff]
        %v569 = vld [vmem:[%s260 + $0x2c8] sm:$0xff]
        %v570 = vld [vmem:[%s260 + $0x2d0] sm:$0xff]
        %v571 = vld [vmem:[%s260 + $0x2d8] sm:$0xff]
        %v572 = vld [vmem:[%s260 + $0x2e0] sm:$0xff]
        %v573 = vld [vmem:[%s260 + $0x2e8] sm:$0xff]
        %v574 = vld [vmem:[%s260 + $0x2f0] sm:$0xff]
        %v575 = vld [vmem:[%s260 + $0x2f8] sm:$0xff]
        %v576 = vld [vmem:[%s260 + $0x300] sm:$0xff]
        %v577 = vld [vmem:[%s260 + $0x308] sm:$0xff]
        %v578 = vld [vmem:[%s260 + $0x310] sm:$0xff]
        %v579 = vld [vmem:[%s260 + $0x318] sm:$0xff]
        %v580 = vld [vmem:[%s260 + $0x320] sm:$0xff]
        %v581 = vld [vmem:[%s260 + $0x328] sm:$0xff]
        %v582 = vld [vmem:[%s260 + $0x330] sm:$0xff]
        %v583 = vld [vmem:[%s260 + $0x338] sm:$0xff]
        %v584 = vld [vmem:[%s260 + $0x340] sm:$0xff]
        %v585 = vld [vmem:[%s260 + $0x348] sm:$0xff]
        %v586 = vld [vmem:[%s260 + $0x350] sm:$0xff]
        %v587 = vld [vmem:[%s260 + $0x358] sm:$0xff]
        %v588 = vld [vmem:[%s260 + $0x360] sm:$0xff]
        %v589 = vld [vmem:[%s260 + $0x368] sm:$0xff]
        %v590 = vld [vmem:[%s260 + $0x370] sm:$0xff]
        %v591 = vld [vmem:[%s260 + $0x378] sm:$0xff]
        %v592 = vld [vmem:[%s260 + $0x380] sm:$0xff]
        %v593 = vld [vmem:[%s260 + $0x388] sm:$0xff]
        %v594 = vld [vmem:[%s260 + $0x390] sm:$0xff]
        %v595 = vld [vmem:[%s260 + $0x398] sm:$0xff]
        %v596 = vld [vmem:[%s260 + $0x3a0] sm:$0xff]
        %v597 = vld [vmem:[%s260 + $0x3a8] sm:$0xff]
        %v598 = vld [vmem:[%s260 + $0x3b0] sm:$0xff]
        %v599 = vld [vmem:[%s260 + $0x3b8] sm:$0xff]
        %v600 = vld [vmem:[%s260 + $0x3c0] sm:$0xff]
        %v601 = vld [vmem:[%s260 + $0x3c8] sm:$0xff]
        %v602 = vld [vmem:[%s260 + $0x3d0] sm:$0xff]
        %v603 = vld [vmem:[%s260 + $0x3d8] sm:$0xff]
        %v604 = vld [vmem:[%s260 + $0x3e0] sm:$0xff]
        %v605 = vld [vmem:[%s260 + $0x3e8] sm:$0xff]
        %v606 = vld [vmem:[%s260 + $0x3f0] sm:$0xff]
        %v607 = vld [vmem:[%s260 + $0x3f8] sm:$0xff]
        %v608 = vld [vmem:[%s260 + $0x400] sm:$0xff]
        %v609 = vld [vmem:[%s260 + $0x408] sm:$0xff]
        %v610 = vld [vmem:[%s260 + $0x410] sm:$0xff]
        %v611 = vld [vmem:[%s260 + $0x418] sm:$0xff]
        %v612 = vld [vmem:[%s260 + $0x420] sm:$0xff]
        %v613 = vld [vmem:[%s260 + $0x428] sm:$0xff]
        %v614 = vld [vmem:[%s260 + $0x430] sm:$0xff]
        %v615 = vld [vmem:[%s260 + $0x438] sm:$0xff]
        %v616 = vld [vmem:[%s260 + $0x440] sm:$0xff]
        %v617 = vld [vmem:[%s260 + $0x448] sm:$0xff]
        %v618 = vld [vmem:[%s260 + $0x450] sm:$0xff]
        %v619 = vld [vmem:[%s260 + $0x458] sm:$0xff]
        %v620 = vld [vmem:[%s260 + $0x460] sm:$0xff]
        %v621 = vld [vmem:[%s260 + $0x468] sm:$0xff]
        %v622 = vld [vmem:[%s260 + $0x470] sm:$0xff]
        %v623 = vld [vmem:[%s260 + $0x478] sm:$0xff]
        %v624 = vld [vmem:[%s260 + $0x480] sm:$0xff]
        %v625 = vld [vmem:[%s260 + $0x488] sm:$0xff]
        %v626 = vld [vmem:[%s260 + $0x490] sm:$0xff]
        %v627 = vld [vmem:[%s260 + $0x498] sm:$0xff]
        %v628 = vld [vmem:[%s260 + $0x4a0] sm:$0xff]
        %v629 = vld [vmem:[%s260 + $0x4a8] sm:$0xff]
        %v630 = vld [vmem:[%s260 + $0x4b0] sm:$0xff]
        %v631 = vld [vmem:[%s260 + $0x4b8] sm:$0xff]
        %v632 = vld [vmem:[%s260 + $0x4c0] sm:$0xff]
        %v633 = vld [vmem:[%s260 + $0x4c8] sm:$0xff]
        %v634 = vld [vmem:[%s260 + $0x4d0] sm:$0xff]
        %v635 = vld [vmem:[%s260 + $0x4d8] sm:$0xff]
        %v636 = vld [vmem:[%s260 + $0x4e0] sm:$0xff]
        %v637 = vld [vmem:[%s260 + $0x4e8] sm:$0xff]
        %v638 = vld [vmem:[%s260 + $0x4f0] sm:$0xff]
        %v639 = vld [vmem:[%s260 + $0x4f8] sm:$0xff]
        %v640 = vld [vmem:[%s260 + $0x500] sm:$0xff]
        %v641 = vld [vmem:[%s260 + $0x508] sm:$0xff]
        %v642 = vld [vmem:[%s260 + $0x510] sm:$0xff]
        %v643 = vld [vmem:[%s260 + $0x518] sm:$0xff]
        %v644 = vld [vmem:[%s260 + $0x520] sm:$0xff]
        %v645 = vld [vmem:[%s260 + $0x528] sm:$0xff]
        %v646 = vld [vmem:[%s260 + $0x530] sm:$0xff]
        %v647 = vld [vmem:[%s260 + $0x538] sm:$0xff]
        %v648 = vld [vmem:[%s260 + $0x540] sm:$0xff]
        %v649 = vld [vmem:[%s260 + $0x548] sm:$0xff]
        %v650 = vld [vmem:[%s260 + $0x550] sm:$0xff]
        %v651 = vld [vmem:[%s260 + $0x558] sm:$0xff]
        %v652 = vld [vmem:[%s260 + $0x560] sm:$0xff]
        %v653 = vld [vmem:[%s260 + $0x568] sm:$0xff]
        %v654 = vld [vmem:[%s260 + $0x570] sm:$0xff]
        %v655 = vld [vmem:[%s260 + $0x578] sm:$0xff]
        %v656 = vld [vmem:[%s260 + $0x580] sm:$0xff]
        %v657 = vld [vmem:[%s260 + $0x588] sm:$0xff]
        %v658 = vld [vmem:[%s260 + $0x590] sm:$0xff]
        %v659 = vld [vmem:[%s260 + $0x598] sm:$0xff]
        %v660 = vld [vmem:[%s260 + $0x5a0] sm:$0xff]
        %v661 = vld [vmem:[%s260 + $0x5a8] sm:$0xff]
        %v662 = vld [vmem:[%s260 + $0x5b0] sm:$0xff]
        %v663 = vld [vmem:[%s260 + $0x5b8] sm:$0xff]
        %v664 = vld [vmem:[%s260 + $0x5c0] sm:$0xff]
        %v665 = vld [vmem:[%s260 + $0x5c8] sm:$0xff]
        %v666 = vld [vmem:[%s260 + $0x5d0] sm:$0xff]
        %v667 = vld [vmem:[%s260 + $0x5d8] sm:$0xff]
        %v668 = vld [vmem:[%s260 + $0x5e0] sm:$0xff]
        %v669 = vld [vmem:[%s260 + $0x5e8] sm:$0xff]
        %v670 = vld [vmem:[%s260 + $0x5f0] sm:$0xff]
        %v671 = vld [vmem:[%s260 + $0x5f8] sm:$0xff]
        %v672 = vld [vmem:[%s230] sm:$0xff]
        %v673 = vld [vmem:[%s230 + $0x8] sm:$0xff]
        %v674 = vld [vmem:[%s230 + $0x10] sm:$0xff]
        %v675 = vld [vmem:[%s230 + $0x18] sm:$0xff]
        %v676 = vld [vmem:[%s230 + $0x20] sm:$0xff]
        %v677 = vld [vmem:[%s230 + $0x28] sm:$0xff]
        %v678 = vld [vmem:[%s230 + $0x30] sm:$0xff]
        %v679 = vld [vmem:[%s230 + $0x38] sm:$0xff]
        %v680 = vld [vmem:[%s230 + $0x40] sm:$0xff]
        %v681 = vld [vmem:[%s230 + $0x48] sm:$0xff]
        %v682 = vld [vmem:[%s230 + $0x50] sm:$0xff]
        %v683 = vld [vmem:[%s230 + $0x58] sm:$0xff]
        %v684 = vld [vmem:[%s230 + $0x60] sm:$0xff]
        %v685 = vld [vmem:[%s230 + $0x68] sm:$0xff]
        %v686 = vld [vmem:[%s230 + $0x70] sm:$0xff]
        %v687 = vld [vmem:[%s230 + $0x78] sm:$0xff]
        %v688 = vld [vmem:[%s230 + $0x80] sm:$0xff]
        %v689 = vld [vmem:[%s230 + $0x88] sm:$0xff]
        %v690 = vld [vmem:[%s230 + $0x90] sm:$0xff]
        %v691 = vld [vmem:[%s230 + $0x98] sm:$0xff]
        %v692 = vld [vmem:[%s230 + $0xa0] sm:$0xff]
        %v693 = vld [vmem:[%s230 + $0xa8] sm:$0xff]
        %v694 = vld [vmem:[%s230 + $0xb0] sm:$0xff]
        %v695 = vld [vmem:[%s230 + $0xb8] sm:$0xff]
        %v696 = vld [vmem:[%s230 + $0xc0] sm:$0xff]
        %v697 = vld [vmem:[%s230 + $0xc8] sm:$0xff]
        %v698 = vld [vmem:[%s230 + $0xd0] sm:$0xff]
        %v699 = vld [vmem:[%s230 + $0xd8] sm:$0xff]
        %v700 = vld [vmem:[%s230 + $0xe0] sm:$0xff]
        %v701 = vld [vmem:[%s230 + $0xe8] sm:$0xff]
        %v702 = vld [vmem:[%s230 + $0xf0] sm:$0xff]
        %v703 = vld [vmem:[%s230 + $0xf8] sm:$0xff]
        %v704 = vld [vmem:[%s230 + $0x100] sm:$0xff]
        %v705 = vld [vmem:[%s230 + $0x108] sm:$0xff]
        %v706 = vld [vmem:[%s230 + $0x110] sm:$0xff]
        %v707 = vld [vmem:[%s230 + $0x118] sm:$0xff]
        %v708 = vld [vmem:[%s230 + $0x120] sm:$0xff]
        %v709 = vld [vmem:[%s230 + $0x128] sm:$0xff]
        %v710 = vld [vmem:[%s230 + $0x130] sm:$0xff]
        %v711 = vld [vmem:[%s230 + $0x138] sm:$0xff]
        %v712 = vld [vmem:[%s230 + $0x140] sm:$0xff]
        %v713 = vld [vmem:[%s230 + $0x148] sm:$0xff]
        %v714 = vld [vmem:[%s230 + $0x150] sm:$0xff]
        %v715 = vld [vmem:[%s230 + $0x158] sm:$0xff]
        %v716 = vld [vmem:[%s230 + $0x160] sm:$0xff]
        %v717 = vld [vmem:[%s230 + $0x168] sm:$0xff]
        %v718 = vld [vmem:[%s230 + $0x170] sm:$0xff]
        %v719 = vld [vmem:[%s230 + $0x178] sm:$0xff]
        %v720 = vld [vmem:[%s230 + $0x180] sm:$0xff]
        %v721 = vld [vmem:[%s230 + $0x188] sm:$0xff]
        %v722 = vld [vmem:[%s230 + $0x190] sm:$0xff]
        %v723 = vld [vmem:[%s230 + $0x198] sm:$0xff]
        %v724 = vld [vmem:[%s230 + $0x1a0] sm:$0xff]
        %v725 = vld [vmem:[%s230 + $0x1a8] sm:$0xff]
        %v726 = vld [vmem:[%s230 + $0x1b0] sm:$0xff]
        %v727 = vld [vmem:[%s230 + $0x1b8] sm:$0xff]
        %v728 = vld [vmem:[%s230 + $0x1c0] sm:$0xff]
        %v729 = vld [vmem:[%s230 + $0x1c8] sm:$0xff]
        %v730 = vld [vmem:[%s230 + $0x1d0] sm:$0xff]
        %v731 = vld [vmem:[%s230 + $0x1d8] sm:$0xff]
        %v732 = vld [vmem:[%s230 + $0x1e0] sm:$0xff]
        %v733 = vld [vmem:[%s230 + $0x1e8] sm:$0xff]
        %v734 = vld [vmem:[%s230 + $0x1f0] sm:$0xff]
        %v735 = vld [vmem:[%s230 + $0x1f8] sm:$0xff]
        %v736 = vld [vmem:[#allocation5] sm:$0xff]
        %v737 = vld [vmem:[#allocation5 + $0x8] sm:$0xff]
        %v738 = vld [vmem:[#allocation5 + $0x10] sm:$0xff]
        %v739 = vld [vmem:[#allocation5 + $0x18] sm:$0xff]
        %v740 = vld [vmem:[#allocation5 + $0x20] sm:$0xff]
        %v741 = vld [vmem:[#allocation5 + $0x28] sm:$0xff]
        %v742 = vld [vmem:[#allocation5 + $0x30] sm:$0xff]
        %v743 = vld [vmem:[#allocation5 + $0x38] sm:$0xff]
        %v744 = vld [vmem:[#allocation5 + $0x40] sm:$0xff]
        %v745 = vld [vmem:[#allocation5 + $0x48] sm:$0xff]
        %v746 = vld [vmem:[#allocation5 + $0x50] sm:$0xff]
        %v747 = vld [vmem:[#allocation5 + $0x58] sm:$0xff]
        %v748 = vld [vmem:[#allocation5 + $0x60] sm:$0xff]
        %v749 = vld [vmem:[#allocation5 + $0x68] sm:$0xff]
        %v750 = vld [vmem:[#allocation5 + $0x70] sm:$0xff]
        %v751 = vld [vmem:[#allocation5 + $0x78] sm:$0xff]
        %v752 = vld [vmem:[#allocation5 + $0x80] sm:$0xff]
        %v753 = vld [vmem:[#allocation5 + $0x88] sm:$0xff]
        %v754 = vld [vmem:[#allocation5 + $0x90] sm:$0xff]
        %v755 = vld [vmem:[#allocation5 + $0x98] sm:$0xff]
        %v756 = vld [vmem:[#allocation5 + $0xa0] sm:$0xff]
        %v757 = vld [vmem:[#allocation5 + $0xa8] sm:$0xff]
        %v758 = vld [vmem:[#allocation5 + $0xb0] sm:$0xff]
        %v759 = vld [vmem:[#allocation5 + $0xb8] sm:$0xff]
        %v760 = vld [vmem:[#allocation5 + $0xc0] sm:$0xff]
        %v761 = vld [vmem:[#allocation5 + $0xc8] sm:$0xff]
        %v762 = vld [vmem:[#allocation5 + $0xd0] sm:$0xff]
        %v763 = vld [vmem:[#allocation5 + $0xd8] sm:$0xff]
        %v764 = vld [vmem:[#allocation5 + $0xe0] sm:$0xff]
        %v765 = vld [vmem:[#allocation5 + $0xe8] sm:$0xff]
        %v766 = vld [vmem:[#allocation5 + $0xf0] sm:$0xff]
        %v767 = vld [vmem:[#allocation5 + $0xf8] sm:$0xff]
        %v768 = vld [vmem:[#allocation5 + $0x100] sm:$0xff]
        %v769 = vld [vmem:[#allocation5 + $0x108] sm:$0xff]
        %v770 = vld [vmem:[#allocation5 + $0x110] sm:$0xff]
        %v771 = vld [vmem:[#allocation5 + $0x118] sm:$0xff]
        %v772 = vld [vmem:[#allocation5 + $0x120] sm:$0xff]
        %v773 = vld [vmem:[#allocation5 + $0x128] sm:$0xff]
        %v774 = vld [vmem:[#allocation5 + $0x130] sm:$0xff]
        %v775 = vld [vmem:[#allocation5 + $0x138] sm:$0xff]
        %v776 = vld [vmem:[#allocation5 + $0x140] sm:$0xff]
        %v777 = vld [vmem:[#allocation5 + $0x148] sm:$0xff]
        %v778 = vld [vmem:[#allocation5 + $0x150] sm:$0xff]
        %v779 = vld [vmem:[#allocation5 + $0x158] sm:$0xff]
        %v780 = vld [vmem:[#allocation5 + $0x160] sm:$0xff]
        %v781 = vld [vmem:[#allocation5 + $0x168] sm:$0xff]
        %v782 = vld [vmem:[#allocation5 + $0x170] sm:$0xff]
        %v783 = vld [vmem:[#allocation5 + $0x178] sm:$0xff]
        %784 = vmatprep.subr.mxu0 %v782
        %785 = vmatpush1.msra.mxu0 %v781
        %786 = vmatprep.subr.mxu0 %v779
        %787 = vmatpush1.msra.mxu0 %v778
        %788 = vmatprep.subr.mxu0 %v776
        %789 = vmatpush1.msra.mxu0 %v775
        %790 = vmatprep.subr.mxu0 %v773
        %791 = vmatpush1.msra.mxu0 %v772
        %792 = vmatprep.subr.mxu0 %v770
        %793 = vmatpush1.msra.mxu0 %v769
        %794 = vmatprep.subr.mxu0 %v767
        %795 = vmatpush1.msra.mxu0 %v766
        %796 = vmatprep.subr.mxu0 %v764
        %797 = vmatpush1.msra.mxu0 %v763
        %798 = vmatprep.subr.mxu0 %v761
        %799 = vmatpush1.msra.mxu0 %v760
        %800 = vmatprep.subr.mxu0 %v758
        %801 = vmatpush1.msra.mxu0 %v757
        %802 = vmatprep.subr.mxu0 %v755
        %803 = vmatpush1.msra.mxu0 %v754
        %804 = vmatprep.subr.mxu0 %v752
        %805 = vmatpush1.msra.mxu0 %v751
        %806 = vmatprep.subr.mxu0 %v749
        %807 = vmatpush1.msra.mxu0 %v748
        %808 = vmatprep.subr.mxu0 %v746
        %809 = vmatpush1.msra.mxu0 %v745
        %810 = vmatprep.subr.mxu0 %v743
        %811 = vmatpush1.msra.mxu0 %v742
        %812 = vmatprep.subr.mxu0 %v740
        %813 = vmatpush1.msra.mxu0 %v739
        %814 = vmatprep.subr.mxu0 %v737
        %815 = vmatpush1.msra.mxu0 %v736
        %816 = vmatprep.subr.mxu0 0.0
        %817 = vmatpush2.msra.mxu0 0.0
        %818 = vmatprep.subr.mxu0 0.0
        %819 = vmatpush2.msra.mxu0 0.0
        %820 = vmatprep.subr.mxu0 0.0
        %821 = vmatpush2.msra.mxu0 0.0
        %822 = vmatprep.subr.mxu0 0.0
        %823 = vmatpush2.msra.mxu0 0.0
        %824 = vmatprep.subr.mxu0 0.0
        %825 = vmatpush2.msra.mxu0 0.0
        %826 = vmatprep.subr.mxu0 0.0
        %827 = vmatpush2.msra.mxu0 0.0
        %828 = vmatprep.subr.mxu0 0.0
        %829 = vmatpush2.msra.mxu0 0.0
        %830 = vmatprep.subr.mxu0 0.0
        %831 = vmatpush2.msra.mxu0 0.0
        %832 = vmatprep.subr.mxu0 0.0
        %833 = vmatpush2.msra.mxu0 0.0
        %834 = vmatprep.subr.mxu0 0.0
        %835 = vmatpush2.msra.mxu0 0.0
        %836 = vmatprep.subr.mxu0 0.0
        %837 = vmatpush2.msra.mxu0 0.0
        %838 = vmatprep.subr.mxu0 0.0
        %839 = vmatpush2.msra.mxu0 0.0
        %840 = vmatprep.subr.mxu0 0.0
        %841 = vmatpush2.msra.mxu0 0.0
        %842 = vmatprep.subr.mxu0 0.0
        %843 = vmatpush2.msra.mxu0 0.0
        %844 = vmatprep.subr.mxu0 0.0
        %845 = vmatpush2.msra.mxu0 0.0
        %846 = vmatprep.subr.mxu0 0.0
        %847 = vmatpush2.msra.mxu0 0.0
        %848 = vmatprep.mubr.f32.mxu0 0.0
        %849 = vmatmul.mubr.f32.gmra.mxu0 %v672
        %v850 = vpop.f32.mrf.mxu0
        %v851 = vadd.f32 0.0, %v850
        %v852 = vpop.f32.mrf.mxu0
        %v853 = vadd.f32 0.0, %v852
        %854 = vmatprep.mubr.f32.mxu0 0.0
        %855 = vmatmul.mubr.f32.gmra.mxu0 %v673
        %v856 = vpop.f32.mrf.mxu0
        %v857 = vadd.f32 0.0, %v856
        %v858 = vpop.f32.mrf.mxu0
        %v859 = vadd.f32 0.0, %v858
        %860 = vmatprep.mubr.f32.mxu0 0.0
        %861 = vmatmul.mubr.f32.gmra.mxu0 %v674
        %v862 = vpop.f32.mrf.mxu0
        %v863 = vadd.f32 0.0, %v862
        %v864 = vpop.f32.mrf.mxu0
        %v865 = vadd.f32 0.0, %v864
        %866 = vmatprep.mubr.f32.mxu0 0.0
        %867 = vmatmul.mubr.f32.gmra.mxu0 %v675
        %v868 = vpop.f32.mrf.mxu0
        %v869 = vadd.f32 0.0, %v868
        %v870 = vpop.f32.mrf.mxu0
        %v871 = vadd.f32 0.0, %v870
        %872 = vmatprep.mubr.f32.mxu0 0.0
        %873 = vmatmul.mubr.f32.gmra.mxu0 %v676
        %v874 = vpop.f32.mrf.mxu0
        %v875 = vadd.f32 0.0, %v874
        %v876 = vpop.f32.mrf.mxu0
        %v877 = vadd.f32 0.0, %v876
        %878 = vmatprep.mubr.f32.mxu0 0.0
        %879 = vmatmul.mubr.f32.gmra.mxu0 %v677
        %v880 = vpop.f32.mrf.mxu0
        %v881 = vadd.f32 0.0, %v880
        %v882 = vpop.f32.mrf.mxu0
        %v883 = vadd.f32 0.0, %v882
        %884 = vmatprep.mubr.f32.mxu0 0.0
        %885 = vmatmul.mubr.f32.gmra.mxu0 %v678
        %v886 = vpop.f32.mrf.mxu0
        %v887 = vadd.f32 0.0, %v886
        %v888 = vpop.f32.mrf.mxu0
        %v889 = vadd.f32 0.0, %v888
        %890 = vmatprep.mubr.f32.mxu0 0.0
        %891 = vmatmul.mubr.f32.gmra.mxu0 %v679
        %v892 = vpop.f32.mrf.mxu0
        %v893 = vadd.f32 0.0, %v892
        %v894 = vpop.f32.mrf.mxu0
        %v895 = vadd.f32 0.0, %v894
        %896 = vmatprep.mubr.f32.mxu0 0.0
        %897 = vmatmul.mubr.f32.gmra.mxu0 %v680
        %v898 = vpop.f32.mrf.mxu0
        %v899 = vadd.f32 0.0, %v898
        %v900 = vpop.f32.mrf.mxu0
        %v901 = vadd.f32 0.0, %v900
        %902 = vmatprep.mubr.f32.mxu0 0.0
        %903 = vmatmul.mubr.f32.gmra.mxu0 %v681
        %v904 = vpop.f32.mrf.mxu0
        %v905 = vadd.f32 0.0, %v904
        %v906 = vpop.f32.mrf.mxu0
        %v907 = vadd.f32 0.0, %v906
        %908 = vmatprep.mubr.f32.mxu0 0.0
        %909 = vmatmul.mubr.f32.gmra.mxu0 %v682
        %v910 = vpop.f32.mrf.mxu0
        %v911 = vadd.f32 0.0, %v910
        %v912 = vpop.f32.mrf.mxu0
        %v913 = vadd.f32 0.0, %v912
        %914 = vmatprep.mubr.f32.mxu0 0.0
        %915 = vmatmul.mubr.f32.gmra.mxu0 %v683
        %v916 = vpop.f32.mrf.mxu0
        %v917 = vadd.f32 0.0, %v916
        %v918 = vpop.f32.mrf.mxu0
        %v919 = vadd.f32 0.0, %v918
        %920 = vmatprep.mubr.f32.mxu0 0.0
        %921 = vmatmul.mubr.f32.gmra.mxu0 %v684
        %v922 = vpop.f32.mrf.mxu0
        %v923 = vadd.f32 0.0, %v922
        %v924 = vpop.f32.mrf.mxu0
        %v925 = vadd.f32 0.0, %v924
        %926 = vmatprep.mubr.f32.mxu0 0.0
        %927 = vmatmul.mubr.f32.gmra.mxu0 %v685
        %v928 = vpop.f32.mrf.mxu0
        %v929 = vadd.f32 0.0, %v928
        %v930 = vpop.f32.mrf.mxu0
        %v931 = vadd.f32 0.0, %v930
        %932 = vmatprep.mubr.f32.mxu0 0.0
        %933 = vmatmul.mubr.f32.gmra.mxu0 %v686
        %v934 = vpop.f32.mrf.mxu0
        %v935 = vadd.f32 0.0, %v934
        %v936 = vpop.f32.mrf.mxu0
        %v937 = vadd.f32 0.0, %v936
        %938 = vmatprep.mubr.f32.mxu0 0.0
        %939 = vmatmul.mubr.f32.gmra.mxu0 %v687
        %v940 = vpop.f32.mrf.mxu0
        %v941 = vadd.f32 0.0, %v940
        %v942 = vpop.f32.mrf.mxu0
        %v943 = vadd.f32 0.0, %v942
        %944 = vmatprep.mubr.f32.mxu0 0.0
        %945 = vmatmul.mubr.f32.gmra.mxu0 %v688
        %v946 = vpop.f32.mrf.mxu0
        %v947 = vadd.f32 0.0, %v946
        %v948 = vpop.f32.mrf.mxu0
        %v949 = vadd.f32 0.0, %v948
        %950 = vmatprep.mubr.f32.mxu0 0.0
        %951 = vmatmul.mubr.f32.gmra.mxu0 %v689
        %v952 = vpop.f32.mrf.mxu0
        %v953 = vadd.f32 0.0, %v952
        %v954 = vpop.f32.mrf.mxu0
        %v955 = vadd.f32 0.0, %v954
        %956 = vmatprep.mubr.f32.mxu0 0.0
        %957 = vmatmul.mubr.f32.gmra.mxu0 %v690
        %v958 = vpop.f32.mrf.mxu0
        %v959 = vadd.f32 0.0, %v958
        %v960 = vpop.f32.mrf.mxu0
        %v961 = vadd.f32 0.0, %v960
        %962 = vmatprep.mubr.f32.mxu0 0.0
        %963 = vmatmul.mubr.f32.gmra.mxu0 %v691
        %v964 = vpop.f32.mrf.mxu0
        %v965 = vadd.f32 0.0, %v964
        %v966 = vpop.f32.mrf.mxu0
        %v967 = vadd.f32 0.0, %v966
        %968 = vmatprep.mubr.f32.mxu0 0.0
        %969 = vmatmul.mubr.f32.gmra.mxu0 %v692
        %v970 = vpop.f32.mrf.mxu0
        %v971 = vadd.f32 0.0, %v970
        %v972 = vpop.f32.mrf.mxu0
        %v973 = vadd.f32 0.0, %v972
        %974 = vmatprep.mubr.f32.mxu0 0.0
        %975 = vmatmul.mubr.f32.gmra.mxu0 %v693
        %v976 = vpop.f32.mrf.mxu0
        %v977 = vadd.f32 0.0, %v976
        %v978 = vpop.f32.mrf.mxu0
        %v979 = vadd.f32 0.0, %v978
        %980 = vmatprep.mubr.f32.mxu0 0.0
        %981 = vmatmul.mubr.f32.gmra.mxu0 %v694
        %v982 = vpop.f32.mrf.mxu0
        %v983 = vadd.f32 0.0, %v982
        %v984 = vpop.f32.mrf.mxu0
        %v985 = vadd.f32 0.0, %v984
        %986 = vmatprep.mubr.f32.mxu0 0.0
        %987 = vmatmul.mubr.f32.gmra.mxu0 %v695
        %v988 = vpop.f32.mrf.mxu0
        %v989 = vadd.f32 0.0, %v988
        %v990 = vpop.f32.mrf.mxu0
        %v991 = vadd.f32 0.0, %v990
        %992 = vmatprep.mubr.f32.mxu0 0.0
        %993 = vmatmul.mubr.f32.gmra.mxu0 %v696
        %v994 = vpop.f32.mrf.mxu0
        %v995 = vadd.f32 0.0, %v994
        %v996 = vpop.f32.mrf.mxu0
        %v997 = vadd.f32 0.0, %v996
        %998 = vmatprep.mubr.f32.mxu0 0.0
        %999 = vmatmul.mubr.f32.gmra.mxu0 %v697
        %v1000 = vpop.f32.mrf.mxu0
        %v1001 = vadd.f32 0.0, %v1000
        %v1002 = vpop.f32.mrf.mxu0
        %v1003 = vadd.f32 0.0, %v1002
        %1004 = vmatprep.mubr.f32.mxu0 0.0
        %1005 = vmatmul.mubr.f32.gmra.mxu0 %v698
        %v1006 = vpop.f32.mrf.mxu0
        %v1007 = vadd.f32 0.0, %v1006
        %v1008 = vpop.f32.mrf.mxu0
        %v1009 = vadd.f32 0.0, %v1008
        %1010 = vmatprep.mubr.f32.mxu0 0.0
        %1011 = vmatmul.mubr.f32.gmra.mxu0 %v699
        %v1012 = vpop.f32.mrf.mxu0
        %v1013 = vadd.f32 0.0, %v1012
        %v1014 = vpop.f32.mrf.mxu0
        %v1015 = vadd.f32 0.0, %v1014
        %1016 = vmatprep.mubr.f32.mxu0 0.0
        %1017 = vmatmul.mubr.f32.gmra.mxu0 %v700
        %v1018 = vpop.f32.mrf.mxu0
        %v1019 = vadd.f32 0.0, %v1018
        %v1020 = vpop.f32.mrf.mxu0
        %v1021 = vadd.f32 0.0, %v1020
        %1022 = vmatprep.mubr.f32.mxu0 0.0
        %1023 = vmatmul.mubr.f32.gmra.mxu0 %v701
        %v1024 = vpop.f32.mrf.mxu0
        %v1025 = vadd.f32 0.0, %v1024
        %v1026 = vpop.f32.mrf.mxu0
        %v1027 = vadd.f32 0.0, %v1026
        %1028 = vmatprep.mubr.f32.mxu0 0.0
        %1029 = vmatmul.mubr.f32.gmra.mxu0 %v702
        %v1030 = vpop.f32.mrf.mxu0
        %v1031 = vadd.f32 0.0, %v1030
        %v1032 = vpop.f32.mrf.mxu0
        %v1033 = vadd.f32 0.0, %v1032
        %1034 = vmatprep.mubr.f32.mxu0 0.0
        %1035 = vmatmul.mubr.f32.gmra.mxu0 %v703
        %v1036 = vpop.f32.mrf.mxu0
        %v1037 = vadd.f32 0.0, %v1036
        %v1038 = vpop.f32.mrf.mxu0
        %v1039 = vadd.f32 0.0, %v1038
        %1040 = vmatprep.mubr.f32.mxu0 0.0
        %1041 = vmatmul.mubr.f32.gmra.mxu0 %v704
        %v1042 = vpop.f32.mrf.mxu0
        %v1043 = vadd.f32 0.0, %v1042
        %v1044 = vpop.f32.mrf.mxu0
        %v1045 = vadd.f32 0.0, %v1044
        %1046 = vmatprep.mubr.f32.mxu0 0.0
        %1047 = vmatmul.mubr.f32.gmra.mxu0 %v705
        %v1048 = vpop.f32.mrf.mxu0
        %v1049 = vadd.f32 0.0, %v1048
        %v1050 = vpop.f32.mrf.mxu0
        %v1051 = vadd.f32 0.0, %v1050
        %1052 = vmatprep.mubr.f32.mxu0 0.0
        %1053 = vmatmul.mubr.f32.gmra.mxu0 %v706
        %v1054 = vpop.f32.mrf.mxu0
        %v1055 = vadd.f32 0.0, %v1054
        %v1056 = vpop.f32.mrf.mxu0
        %v1057 = vadd.f32 0.0, %v1056
        %1058 = vmatprep.mubr.f32.mxu0 0.0
        %1059 = vmatmul.mubr.f32.gmra.mxu0 %v707
        %v1060 = vpop.f32.mrf.mxu0
        %v1061 = vadd.f32 0.0, %v1060
        %v1062 = vpop.f32.mrf.mxu0
        %v1063 = vadd.f32 0.0, %v1062
        %1064 = vmatprep.mubr.f32.mxu0 0.0
        %1065 = vmatmul.mubr.f32.gmra.mxu0 %v708
        %v1066 = vpop.f32.mrf.mxu0
        %v1067 = vadd.f32 0.0, %v1066
        %v1068 = vpop.f32.mrf.mxu0
        %v1069 = vadd.f32 0.0, %v1068
        %1070 = vmatprep.mubr.f32.mxu0 0.0
        %1071 = vmatmul.mubr.f32.gmra.mxu0 %v709
        %v1072 = vpop.f32.mrf.mxu0
        %v1073 = vadd.f32 0.0, %v1072
        %v1074 = vpop.f32.mrf.mxu0
        %v1075 = vadd.f32 0.0, %v1074
        %1076 = vmatprep.mubr.f32.mxu0 0.0
        %1077 = vmatmul.mubr.f32.gmra.mxu0 %v710
        %v1078 = vpop.f32.mrf.mxu0
        %v1079 = vadd.f32 0.0, %v1078
        %v1080 = vpop.f32.mrf.mxu0
        %v1081 = vadd.f32 0.0, %v1080
        %1082 = vmatprep.mubr.f32.mxu0 0.0
        %1083 = vmatmul.mubr.f32.gmra.mxu0 %v711
        %v1084 = vpop.f32.mrf.mxu0
        %v1085 = vadd.f32 0.0, %v1084
        %v1086 = vpop.f32.mrf.mxu0
        %v1087 = vadd.f32 0.0, %v1086
        %1088 = vmatprep.mubr.f32.mxu0 0.0
        %1089 = vmatmul.mubr.f32.gmra.mxu0 %v712
        %v1090 = vpop.f32.mrf.mxu0
        %v1091 = vadd.f32 0.0, %v1090
        %v1092 = vpop.f32.mrf.mxu0
        %v1093 = vadd.f32 0.0, %v1092
        %1094 = vmatprep.mubr.f32.mxu0 0.0
        %1095 = vmatmul.mubr.f32.gmra.mxu0 %v713
        %v1096 = vpop.f32.mrf.mxu0
        %v1097 = vadd.f32 0.0, %v1096
        %v1098 = vpop.f32.mrf.mxu0
        %v1099 = vadd.f32 0.0, %v1098
        %1100 = vmatprep.mubr.f32.mxu0 0.0
        %1101 = vmatmul.mubr.f32.gmra.mxu0 %v714
        %v1102 = vpop.f32.mrf.mxu0
        %v1103 = vadd.f32 0.0, %v1102
        %v1104 = vpop.f32.mrf.mxu0
        %v1105 = vadd.f32 0.0, %v1104
        %1106 = vmatprep.mubr.f32.mxu0 0.0
        %1107 = vmatmul.mubr.f32.gmra.mxu0 %v715
        %v1108 = vpop.f32.mrf.mxu0
        %v1109 = vadd.f32 0.0, %v1108
        %v1110 = vpop.f32.mrf.mxu0
        %v1111 = vadd.f32 0.0, %v1110
        %1112 = vmatprep.mubr.f32.mxu0 0.0
        %1113 = vmatmul.mubr.f32.gmra.mxu0 %v716
        %v1114 = vpop.f32.mrf.mxu0
        %v1115 = vadd.f32 0.0, %v1114
        %v1116 = vpop.f32.mrf.mxu0
        %v1117 = vadd.f32 0.0, %v1116
        %1118 = vmatprep.mubr.f32.mxu0 0.0
        %1119 = vmatmul.mubr.f32.gmra.mxu0 %v717
        %v1120 = vpop.f32.mrf.mxu0
        %v1121 = vadd.f32 0.0, %v1120
        %v1122 = vpop.f32.mrf.mxu0
        %v1123 = vadd.f32 0.0, %v1122
        %1124 = vmatprep.mubr.f32.mxu0 0.0
        %1125 = vmatmul.mubr.f32.gmra.mxu0 %v718
        %v1126 = vpop.f32.mrf.mxu0
        %v1127 = vadd.f32 0.0, %v1126
        %v1128 = vpop.f32.mrf.mxu0
        %v1129 = vadd.f32 0.0, %v1128
        %1130 = vmatprep.mubr.f32.mxu0 0.0
        %1131 = vmatmul.mubr.f32.gmra.mxu0 %v719
        %v1132 = vpop.f32.mrf.mxu0
        %v1133 = vadd.f32 0.0, %v1132
        %v1134 = vpop.f32.mrf.mxu0
        %v1135 = vadd.f32 0.0, %v1134
        %1136 = vmatprep.mubr.f32.mxu0 0.0
        %1137 = vmatmul.mubr.f32.gmra.mxu0 %v720
        %v1138 = vpop.f32.mrf.mxu0
        %v1139 = vadd.f32 0.0, %v1138
        %v1140 = vpop.f32.mrf.mxu0
        %v1141 = vadd.f32 0.0, %v1140
        %1142 = vmatprep.mubr.f32.mxu0 0.0
        %1143 = vmatmul.mubr.f32.gmra.mxu0 %v721
        %v1144 = vpop.f32.mrf.mxu0
        %v1145 = vadd.f32 0.0, %v1144
        %v1146 = vpop.f32.mrf.mxu0
        %v1147 = vadd.f32 0.0, %v1146
        %1148 = vmatprep.mubr.f32.mxu0 0.0
        %1149 = vmatmul.mubr.f32.gmra.mxu0 %v722
        %v1150 = vpop.f32.mrf.mxu0
        %v1151 = vadd.f32 0.0, %v1150
        %v1152 = vpop.f32.mrf.mxu0
        %v1153 = vadd.f32 0.0, %v1152
        %1154 = vmatprep.mubr.f32.mxu0 0.0
        %1155 = vmatmul.mubr.f32.gmra.mxu0 %v723
        %v1156 = vpop.f32.mrf.mxu0
        %v1157 = vadd.f32 0.0, %v1156
        %v1158 = vpop.f32.mrf.mxu0
        %v1159 = vadd.f32 0.0, %v1158
        %1160 = vmatprep.mubr.f32.mxu0 0.0
        %1161 = vmatmul.mubr.f32.gmra.mxu0 %v724
        %v1162 = vpop.f32.mrf.mxu0
        %v1163 = vadd.f32 0.0, %v1162
        %v1164 = vpop.f32.mrf.mxu0
        %v1165 = vadd.f32 0.0, %v1164
        %1166 = vmatprep.mubr.f32.mxu0 0.0
        %1167 = vmatmul.mubr.f32.gmra.mxu0 %v725
        %v1168 = vpop.f32.mrf.mxu0
        %v1169 = vadd.f32 0.0, %v1168
        %v1170 = vpop.f32.mrf.mxu0
        %v1171 = vadd.f32 0.0, %v1170
        %1172 = vmatprep.mubr.f32.mxu0 0.0
        %1173 = vmatmul.mubr.f32.gmra.mxu0 %v726
        %v1174 = vpop.f32.mrf.mxu0
        %v1175 = vadd.f32 0.0, %v1174
        %v1176 = vpop.f32.mrf.mxu0
        %v1177 = vadd.f32 0.0, %v1176
        %1178 = vmatprep.mubr.f32.mxu0 0.0
        %1179 = vmatmul.mubr.f32.gmra.mxu0 %v727
        %v1180 = vpop.f32.mrf.mxu0
        %v1181 = vadd.f32 0.0, %v1180
        %v1182 = vpop.f32.mrf.mxu0
        %v1183 = vadd.f32 0.0, %v1182
        %1184 = vmatprep.mubr.f32.mxu0 0.0
        %1185 = vmatmul.mubr.f32.gmra.mxu0 %v728
        %v1186 = vpop.f32.mrf.mxu0
        %v1187 = vadd.f32 0.0, %v1186
        %v1188 = vpop.f32.mrf.mxu0
        %v1189 = vadd.f32 0.0, %v1188
        %1190 = vmatprep.mubr.f32.mxu0 0.0
        %1191 = vmatmul.mubr.f32.gmra.mxu0 %v729
        %v1192 = vpop.f32.mrf.mxu0
        %v1193 = vadd.f32 0.0, %v1192
        %v1194 = vpop.f32.mrf.mxu0
        %v1195 = vadd.f32 0.0, %v1194
        %1196 = vmatprep.mubr.f32.mxu0 0.0
        %1197 = vmatmul.mubr.f32.gmra.mxu0 %v730
        %v1198 = vpop.f32.mrf.mxu0
        %v1199 = vadd.f32 0.0, %v1198
        %v1200 = vpop.f32.mrf.mxu0
        %v1201 = vadd.f32 0.0, %v1200
        %1202 = vmatprep.mubr.f32.mxu0 0.0
        %1203 = vmatmul.mubr.f32.gmra.mxu0 %v731
        %v1204 = vpop.f32.mrf.mxu0
        %v1205 = vadd.f32 0.0, %v1204
        %v1206 = vpop.f32.mrf.mxu0
        %v1207 = vadd.f32 0.0, %v1206
        %1208 = vmatprep.mubr.f32.mxu0 0.0
        %1209 = vmatmul.mubr.f32.gmra.mxu0 %v732
        %v1210 = vpop.f32.mrf.mxu0
        %v1211 = vadd.f32 0.0, %v1210
        %v1212 = vpop.f32.mrf.mxu0
        %v1213 = vadd.f32 0.0, %v1212
        %1214 = vmatprep.mubr.f32.mxu0 0.0
        %1215 = vmatmul.mubr.f32.gmra.mxu0 %v733
        %v1216 = vpop.f32.mrf.mxu0
        %v1217 = vadd.f32 0.0, %v1216
        %v1218 = vpop.f32.mrf.mxu0
        %v1219 = vadd.f32 0.0, %v1218
        %1220 = vmatprep.mubr.f32.mxu0 0.0
        %1221 = vmatmul.mubr.f32.gmra.mxu0 %v734
        %v1222 = vpop.f32.mrf.mxu0
        %v1223 = vadd.f32 0.0, %v1222
        %v1224 = vpop.f32.mrf.mxu0
        %v1225 = vadd.f32 0.0, %v1224
        %1226 = vmatprep.mubr.f32.mxu0 0.0
        %1227 = vmatmul.mubr.f32.gmra.mxu0 %v735
        %v1228 = vpop.f32.mrf.mxu0
        %v1229 = vadd.f32 0.0, %v1228
        %v1230 = vpop.f32.mrf.mxu0
        %v1231 = vadd.f32 0.0, %v1230
        %1232 = vdwg.mxu0
        %1233 = vmatprep.subr.mxu0 0.0
        %1234 = vmatpush1.msra.mxu0 %v783
        %1235 = vmatprep.subr.mxu0 0.0
        %1236 = vmatpush1.msra.mxu0 %v780
        %1237 = vmatprep.subr.mxu0 0.0
        %1238 = vmatpush1.msra.mxu0 %v777
        %1239 = vmatprep.subr.mxu0 0.0
        %1240 = vmatpush1.msra.mxu0 %v774
        %1241 = vmatprep.subr.mxu0 0.0
        %1242 = vmatpush1.msra.mxu0 %v771
        %1243 = vmatprep.subr.mxu0 0.0
        %1244 = vmatpush1.msra.mxu0 %v768
        %1245 = vmatprep.subr.mxu0 0.0
        %1246 = vmatpush1.msra.mxu0 %v765
        %1247 = vmatprep.subr.mxu0 0.0
        %1248 = vmatpush1.msra.mxu0 %v762
        %1249 = vmatprep.subr.mxu0 0.0
        %1250 = vmatpush1.msra.mxu0 %v759
        %1251 = vmatprep.subr.mxu0 0.0
        %1252 = vmatpush1.msra.mxu0 %v756
        %1253 = vmatprep.subr.mxu0 0.0
        %1254 = vmatpush1.msra.mxu0 %v753
        %1255 = vmatprep.subr.mxu0 0.0
        %1256 = vmatpush1.msra.mxu0 %v750
        %1257 = vmatprep.subr.mxu0 0.0
        %1258 = vmatpush1.msra.mxu0 %v747
        %1259 = vmatprep.subr.mxu0 0.0
        %1260 = vmatpush1.msra.mxu0 %v744
        %1261 = vmatprep.subr.mxu0 0.0
        %1262 = vmatpush1.msra.mxu0 %v741
        %1263 = vmatprep.subr.mxu0 0.0
        %1264 = vmatpush1.msra.mxu0 %v738
        %1265 = vmatprep.subr.mxu0 0.0
        %1266 = vmatpush2.msra.mxu0 0.0
        %1267 = vmatprep.subr.mxu0 0.0
        %1268 = vmatpush2.msra.mxu0 0.0
        %1269 = vmatprep.subr.mxu0 0.0
        %1270 = vmatpush2.msra.mxu0 0.0
        %1271 = vmatprep.subr.mxu0 0.0
        %1272 = vmatpush2.msra.mxu0 0.0
        %1273 = vmatprep.subr.mxu0 0.0
        %1274 = vmatpush2.msra.mxu0 0.0
        %1275 = vmatprep.subr.mxu0 0.0
        %1276 = vmatpush2.msra.mxu0 0.0
        %1277 = vmatprep.subr.mxu0 0.0
        %1278 = vmatpush2.msra.mxu0 0.0
        %1279 = vmatprep.subr.mxu0 0.0
        %1280 = vmatpush2.msra.mxu0 0.0
        %1281 = vmatprep.subr.mxu0 0.0
        %1282 = vmatpush2.msra.mxu0 0.0
        %1283 = vmatprep.subr.mxu0 0.0
        %1284 = vmatpush2.msra.mxu0 0.0
        %1285 = vmatprep.subr.mxu0 0.0
        %1286 = vmatpush2.msra.mxu0 0.0
        %1287 = vmatprep.subr.mxu0 0.0
        %1288 = vmatpush2.msra.mxu0 0.0
        %1289 = vmatprep.subr.mxu0 0.0
        %1290 = vmatpush2.msra.mxu0 0.0
        %1291 = vmatprep.subr.mxu0 0.0
        %1292 = vmatpush2.msra.mxu0 0.0
        %1293 = vmatprep.subr.mxu0 0.0
        %1294 = vmatpush2.msra.mxu0 0.0
        %1295 = vmatprep.subr.mxu0 0.0
        %1296 = vmatpush2.msra.mxu0 0.0
        %1297 = vmatprep.mubr.f32.mxu0 0.0
        %1298 = vmatmul.mubr.f32.gmra.mxu0 %v672
        %v1299 = vpop.f32.mrf.mxu0
        %v1300 = vadd.f32 0.0, %v1299
        %v1301 = vpop.f32.mrf.mxu0
        %1302 = vmatprep.mubr.f32.mxu0 0.0
        %1303 = vmatmul.mubr.f32.gmra.mxu0 %v673
        %v1304 = vpop.f32.mrf.mxu0
        %v1305 = vadd.f32 0.0, %v1304
        %v1306 = vpop.f32.mrf.mxu0
        %1307 = vmatprep.mubr.f32.mxu0 0.0
        %1308 = vmatmul.mubr.f32.gmra.mxu0 %v674
        %v1309 = vpop.f32.mrf.mxu0
        %v1310 = vadd.f32 0.0, %v1309
        %v1311 = vpop.f32.mrf.mxu0
        %1312 = vmatprep.mubr.f32.mxu0 0.0
        %1313 = vmatmul.mubr.f32.gmra.mxu0 %v675
        %v1314 = vpop.f32.mrf.mxu0
        %v1315 = vadd.f32 0.0, %v1314
        %v1316 = vpop.f32.mrf.mxu0
        %1317 = vmatprep.mubr.f32.mxu0 0.0
        %1318 = vmatmul.mubr.f32.gmra.mxu0 %v676
        %v1319 = vpop.f32.mrf.mxu0
        %v1320 = vadd.f32 0.0, %v1319
        %v1321 = vpop.f32.mrf.mxu0
        %1322 = vmatprep.mubr.f32.mxu0 0.0
        %1323 = vmatmul.mubr.f32.gmra.mxu0 %v677
        %v1324 = vpop.f32.mrf.mxu0
        %v1325 = vadd.f32 0.0, %v1324
        %v1326 = vpop.f32.mrf.mxu0
        %1327 = vmatprep.mubr.f32.mxu0 0.0
        %1328 = vmatmul.mubr.f32.gmra.mxu0 %v678
        %v1329 = vpop.f32.mrf.mxu0
        %v1330 = vadd.f32 0.0, %v1329
        %v1331 = vpop.f32.mrf.mxu0
        %1332 = vmatprep.mubr.f32.mxu0 0.0
        %1333 = vmatmul.mubr.f32.gmra.mxu0 %v679
        %v1334 = vpop.f32.mrf.mxu0
        %v1335 = vadd.f32 0.0, %v1334
        %v1336 = vpop.f32.mrf.mxu0
        %1337 = vmatprep.mubr.f32.mxu0 0.0
        %1338 = vmatmul.mubr.f32.gmra.mxu0 %v680
        %v1339 = vpop.f32.mrf.mxu0
        %v1340 = vadd.f32 0.0, %v1339
        %v1341 = vpop.f32.mrf.mxu0
        %1342 = vmatprep.mubr.f32.mxu0 0.0
        %1343 = vmatmul.mubr.f32.gmra.mxu0 %v681
        %v1344 = vpop.f32.mrf.mxu0
        %v1345 = vadd.f32 0.0, %v1344
        %v1346 = vpop.f32.mrf.mxu0
        %1347 = vmatprep.mubr.f32.mxu0 0.0
        %1348 = vmatmul.mubr.f32.gmra.mxu0 %v682
        %v1349 = vpop.f32.mrf.mxu0
        %v1350 = vadd.f32 0.0, %v1349
        %v1351 = vpop.f32.mrf.mxu0
        %1352 = vmatprep.mubr.f32.mxu0 0.0
        %1353 = vmatmul.mubr.f32.gmra.mxu0 %v683
        %v1354 = vpop.f32.mrf.mxu0
        %v1355 = vadd.f32 0.0, %v1354
        %v1356 = vpop.f32.mrf.mxu0
        %1357 = vmatprep.mubr.f32.mxu0 0.0
        %1358 = vmatmul.mubr.f32.gmra.mxu0 %v684
        %v1359 = vpop.f32.mrf.mxu0
        %v1360 = vadd.f32 0.0, %v1359
        %v1361 = vpop.f32.mrf.mxu0
        %1362 = vmatprep.mubr.f32.mxu0 0.0
        %1363 = vmatmul.mubr.f32.gmra.mxu0 %v685
        %v1364 = vpop.f32.mrf.mxu0
        %v1365 = vadd.f32 0.0, %v1364
        %v1366 = vpop.f32.mrf.mxu0
        %1367 = vmatprep.mubr.f32.mxu0 0.0
        %1368 = vmatmul.mubr.f32.gmra.mxu0 %v686
        %v1369 = vpop.f32.mrf.mxu0
        %v1370 = vadd.f32 0.0, %v1369
        %v1371 = vpop.f32.mrf.mxu0
        %1372 = vmatprep.mubr.f32.mxu0 0.0
        %1373 = vmatmul.mubr.f32.gmra.mxu0 %v687
        %v1374 = vpop.f32.mrf.mxu0
        %v1375 = vadd.f32 0.0, %v1374
        %v1376 = vpop.f32.mrf.mxu0
        %1377 = vmatprep.mubr.f32.mxu0 0.0
        %1378 = vmatmul.mubr.f32.gmra.mxu0 %v688
        %v1379 = vpop.f32.mrf.mxu0
        %v1380 = vadd.f32 0.0, %v1379
        %v1381 = vpop.f32.mrf.mxu0
        %1382 = vmatprep.mubr.f32.mxu0 0.0
        %1383 = vmatmul.mubr.f32.gmra.mxu0 %v689
        %v1384 = vpop.f32.mrf.mxu0
        %v1385 = vadd.f32 0.0, %v1384
        %v1386 = vpop.f32.mrf.mxu0
        %1387 = vmatprep.mubr.f32.mxu0 0.0
        %1388 = vmatmul.mubr.f32.gmra.mxu0 %v690
        %v1389 = vpop.f32.mrf.mxu0
        %v1390 = vadd.f32 0.0, %v1389
        %v1391 = vpop.f32.mrf.mxu0
        %1392 = vmatprep.mubr.f32.mxu0 0.0
        %1393 = vmatmul.mubr.f32.gmra.mxu0 %v691
        %v1394 = vpop.f32.mrf.mxu0
        %v1395 = vadd.f32 0.0, %v1394
        %v1396 = vpop.f32.mrf.mxu0
        %1397 = vmatprep.mubr.f32.mxu0 0.0
        %1398 = vmatmul.mubr.f32.gmra.mxu0 %v692
        %v1399 = vpop.f32.mrf.mxu0
        %v1400 = vadd.f32 0.0, %v1399
        %v1401 = vpop.f32.mrf.mxu0
        %1402 = vmatprep.mubr.f32.mxu0 0.0
        %1403 = vmatmul.mubr.f32.gmra.mxu0 %v693
        %v1404 = vpop.f32.mrf.mxu0
        %v1405 = vadd.f32 0.0, %v1404
        %v1406 = vpop.f32.mrf.mxu0
        %1407 = vmatprep.mubr.f32.mxu0 0.0
        %1408 = vmatmul.mubr.f32.gmra.mxu0 %v694
        %v1409 = vpop.f32.mrf.mxu0
        %v1410 = vadd.f32 0.0, %v1409
        %v1411 = vpop.f32.mrf.mxu0
        %1412 = vmatprep.mubr.f32.mxu0 0.0
        %1413 = vmatmul.mubr.f32.gmra.mxu0 %v695
        %v1414 = vpop.f32.mrf.mxu0
        %v1415 = vadd.f32 0.0, %v1414
        %v1416 = vpop.f32.mrf.mxu0
        %1417 = vmatprep.mubr.f32.mxu0 0.0
        %1418 = vmatmul.mubr.f32.gmra.mxu0 %v696
        %v1419 = vpop.f32.mrf.mxu0
        %v1420 = vadd.f32 0.0, %v1419
        %v1421 = vpop.f32.mrf.mxu0
        %1422 = vmatprep.mubr.f32.mxu0 0.0
        %1423 = vmatmul.mubr.f32.gmra.mxu0 %v697
        %v1424 = vpop.f32.mrf.mxu0
        %v1425 = vadd.f32 0.0, %v1424
        %v1426 = vpop.f32.mrf.mxu0
        %1427 = vmatprep.mubr.f32.mxu0 0.0
        %1428 = vmatmul.mubr.f32.gmra.mxu0 %v698
        %v1429 = vpop.f32.mrf.mxu0
        %v1430 = vadd.f32 0.0, %v1429
        %v1431 = vpop.f32.mrf.mxu0
        %1432 = vmatprep.mubr.f32.mxu0 0.0
        %1433 = vmatmul.mubr.f32.gmra.mxu0 %v699
        %v1434 = vpop.f32.mrf.mxu0
        %v1435 = vadd.f32 0.0, %v1434
        %v1436 = vpop.f32.mrf.mxu0
        %1437 = vmatprep.mubr.f32.mxu0 0.0
        %1438 = vmatmul.mubr.f32.gmra.mxu0 %v700
        %v1439 = vpop.f32.mrf.mxu0
        %v1440 = vadd.f32 0.0, %v1439
        %v1441 = vpop.f32.mrf.mxu0
        %1442 = vmatprep.mubr.f32.mxu0 0.0
        %1443 = vmatmul.mubr.f32.gmra.mxu0 %v701
        %v1444 = vpop.f32.mrf.mxu0
        %v1445 = vadd.f32 0.0, %v1444
        %v1446 = vpop.f32.mrf.mxu0
        %1447 = vmatprep.mubr.f32.mxu0 0.0
        %1448 = vmatmul.mubr.f32.gmra.mxu0 %v702
        %v1449 = vpop.f32.mrf.mxu0
        %v1450 = vadd.f32 0.0, %v1449
        %v1451 = vpop.f32.mrf.mxu0
        %1452 = vmatprep.mubr.f32.mxu0 0.0
        %1453 = vmatmul.mubr.f32.gmra.mxu0 %v703
        %v1454 = vpop.f32.mrf.mxu0
        %v1455 = vadd.f32 0.0, %v1454
        %v1456 = vpop.f32.mrf.mxu0
        %1457 = vmatprep.mubr.f32.mxu0 0.0
        %1458 = vmatmul.mubr.f32.gmra.mxu0 %v704
        %v1459 = vpop.f32.mrf.mxu0
        %v1460 = vadd.f32 0.0, %v1459
        %v1461 = vpop.f32.mrf.mxu0
        %1462 = vmatprep.mubr.f32.mxu0 0.0
        %1463 = vmatmul.mubr.f32.gmra.mxu0 %v705
        %v1464 = vpop.f32.mrf.mxu0
        %v1465 = vadd.f32 0.0, %v1464
        %v1466 = vpop.f32.mrf.mxu0
        %1467 = vmatprep.mubr.f32.mxu0 0.0
        %1468 = vmatmul.mubr.f32.gmra.mxu0 %v706
        %v1469 = vpop.f32.mrf.mxu0
        %v1470 = vadd.f32 0.0, %v1469
        %v1471 = vpop.f32.mrf.mxu0
        %1472 = vmatprep.mubr.f32.mxu0 0.0
        %1473 = vmatmul.mubr.f32.gmra.mxu0 %v707
        %v1474 = vpop.f32.mrf.mxu0
        %v1475 = vadd.f32 0.0, %v1474
        %v1476 = vpop.f32.mrf.mxu0
        %1477 = vmatprep.mubr.f32.mxu0 0.0
        %1478 = vmatmul.mubr.f32.gmra.mxu0 %v708
        %v1479 = vpop.f32.mrf.mxu0
        %v1480 = vadd.f32 0.0, %v1479
        %v1481 = vpop.f32.mrf.mxu0
        %1482 = vmatprep.mubr.f32.mxu0 0.0
        %1483 = vmatmul.mubr.f32.gmra.mxu0 %v709
        %v1484 = vpop.f32.mrf.mxu0
        %v1485 = vadd.f32 0.0, %v1484
        %v1486 = vpop.f32.mrf.mxu0
        %1487 = vmatprep.mubr.f32.mxu0 0.0
        %1488 = vmatmul.mubr.f32.gmra.mxu0 %v710
        %v1489 = vpop.f32.mrf.mxu0
        %v1490 = vadd.f32 0.0, %v1489
        %v1491 = vpop.f32.mrf.mxu0
        %1492 = vmatprep.mubr.f32.mxu0 0.0
        %1493 = vmatmul.mubr.f32.gmra.mxu0 %v711
        %v1494 = vpop.f32.mrf.mxu0
        %v1495 = vadd.f32 0.0, %v1494
        %v1496 = vpop.f32.mrf.mxu0
        %1497 = vmatprep.mubr.f32.mxu0 0.0
        %1498 = vmatmul.mubr.f32.gmra.mxu0 %v712
        %v1499 = vpop.f32.mrf.mxu0
        %v1500 = vadd.f32 0.0, %v1499
        %v1501 = vpop.f32.mrf.mxu0
        %1502 = vmatprep.mubr.f32.mxu0 0.0
        %1503 = vmatmul.mubr.f32.gmra.mxu0 %v713
        %v1504 = vpop.f32.mrf.mxu0
        %v1505 = vadd.f32 0.0, %v1504
        %v1506 = vpop.f32.mrf.mxu0
        %1507 = vmatprep.mubr.f32.mxu0 0.0
        %1508 = vmatmul.mubr.f32.gmra.mxu0 %v714
        %v1509 = vpop.f32.mrf.mxu0
        %v1510 = vadd.f32 0.0, %v1509
        %v1511 = vpop.f32.mrf.mxu0
        %1512 = vmatprep.mubr.f32.mxu0 0.0
        %1513 = vmatmul.mubr.f32.gmra.mxu0 %v715
        %v1514 = vpop.f32.mrf.mxu0
        %v1515 = vadd.f32 0.0, %v1514
        %v1516 = vpop.f32.mrf.mxu0
        %1517 = vmatprep.mubr.f32.mxu0 0.0
        %1518 = vmatmul.mubr.f32.gmra.mxu0 %v716
        %v1519 = vpop.f32.mrf.mxu0
        %v1520 = vadd.f32 0.0, %v1519
        %v1521 = vpop.f32.mrf.mxu0
        %1522 = vmatprep.mubr.f32.mxu0 0.0
        %1523 = vmatmul.mubr.f32.gmra.mxu0 %v717
        %v1524 = vpop.f32.mrf.mxu0
        %v1525 = vadd.f32 0.0, %v1524
        %v1526 = vpop.f32.mrf.mxu0
        %1527 = vmatprep.mubr.f32.mxu0 0.0
        %1528 = vmatmul.mubr.f32.gmra.mxu0 %v718
        %v1529 = vpop.f32.mrf.mxu0
        %v1530 = vadd.f32 0.0, %v1529
        %v1531 = vpop.f32.mrf.mxu0
        %1532 = vmatprep.mubr.f32.mxu0 0.0
        %1533 = vmatmul.mubr.f32.gmra.mxu0 %v719
        %v1534 = vpop.f32.mrf.mxu0
        %v1535 = vadd.f32 0.0, %v1534
        %v1536 = vpop.f32.mrf.mxu0
        %1537 = vmatprep.mubr.f32.mxu0 0.0
        %1538 = vmatmul.mubr.f32.gmra.mxu0 %v720
        %v1539 = vpop.f32.mrf.mxu0
        %v1540 = vadd.f32 0.0, %v1539
        %v1541 = vpop.f32.mrf.mxu0
        %1542 = vmatprep.mubr.f32.mxu0 0.0
        %1543 = vmatmul.mubr.f32.gmra.mxu0 %v721
        %v1544 = vpop.f32.mrf.mxu0
        %v1545 = vadd.f32 0.0, %v1544
        %v1546 = vpop.f32.mrf.mxu0
        %1547 = vmatprep.mubr.f32.mxu0 0.0
        %1548 = vmatmul.mubr.f32.gmra.mxu0 %v722
        %v1549 = vpop.f32.mrf.mxu0
        %v1550 = vadd.f32 0.0, %v1549
        %v1551 = vpop.f32.mrf.mxu0
        %1552 = vmatprep.mubr.f32.mxu0 0.0
        %1553 = vmatmul.mubr.f32.gmra.mxu0 %v723
        %v1554 = vpop.f32.mrf.mxu0
        %v1555 = vadd.f32 0.0, %v1554
        %v1556 = vpop.f32.mrf.mxu0
        %1557 = vmatprep.mubr.f32.mxu0 0.0
        %1558 = vmatmul.mubr.f32.gmra.mxu0 %v724
        %v1559 = vpop.f32.mrf.mxu0
        %v1560 = vadd.f32 0.0, %v1559
        %v1561 = vpop.f32.mrf.mxu0
        %1562 = vmatprep.mubr.f32.mxu0 0.0
        %1563 = vmatmul.mubr.f32.gmra.mxu0 %v725
        %v1564 = vpop.f32.mrf.mxu0
        %v1565 = vadd.f32 0.0, %v1564
        %v1566 = vpop.f32.mrf.mxu0
        %1567 = vmatprep.mubr.f32.mxu0 0.0
        %1568 = vmatmul.mubr.f32.gmra.mxu0 %v726
        %v1569 = vpop.f32.mrf.mxu0
        %v1570 = vadd.f32 0.0, %v1569
        %v1571 = vpop.f32.mrf.mxu0
        %1572 = vmatprep.mubr.f32.mxu0 0.0
        %1573 = vmatmul.mubr.f32.gmra.mxu0 %v727
        %v1574 = vpop.f32.mrf.mxu0
        %v1575 = vadd.f32 0.0, %v1574
        %v1576 = vpop.f32.mrf.mxu0
        %1577 = vmatprep.mubr.f32.mxu0 0.0
        %1578 = vmatmul.mubr.f32.gmra.mxu0 %v728
        %v1579 = vpop.f32.mrf.mxu0
        %v1580 = vadd.f32 0.0, %v1579
        %v1581 = vpop.f32.mrf.mxu0
        %1582 = vmatprep.mubr.f32.mxu0 0.0
        %1583 = vmatmul.mubr.f32.gmra.mxu0 %v729
        %v1584 = vpop.f32.mrf.mxu0
        %v1585 = vadd.f32 0.0, %v1584
        %v1586 = vpop.f32.mrf.mxu0
        %1587 = vmatprep.mubr.f32.mxu0 0.0
        %1588 = vmatmul.mubr.f32.gmra.mxu0 %v730
        %v1589 = vpop.f32.mrf.mxu0
        %v1590 = vadd.f32 0.0, %v1589
        %v1591 = vpop.f32.mrf.mxu0
        %1592 = vmatprep.mubr.f32.mxu0 0.0
        %1593 = vmatmul.mubr.f32.gmra.mxu0 %v731
        %v1594 = vpop.f32.mrf.mxu0
        %v1595 = vadd.f32 0.0, %v1594
        %v1596 = vpop.f32.mrf.mxu0
        %1597 = vmatprep.mubr.f32.mxu0 0.0
        %1598 = vmatmul.mubr.f32.gmra.mxu0 %v732
        %v1599 = vpop.f32.mrf.mxu0
        %v1600 = vadd.f32 0.0, %v1599
        %v1601 = vpop.f32.mrf.mxu0
        %1602 = vmatprep.mubr.f32.mxu0 0.0
        %1603 = vmatmul.mubr.f32.gmra.mxu0 %v733
        %v1604 = vpop.f32.mrf.mxu0
        %v1605 = vadd.f32 0.0, %v1604
        %v1606 = vpop.f32.mrf.mxu0
        %1607 = vmatprep.mubr.f32.mxu0 0.0
        %1608 = vmatmul.mubr.f32.gmra.mxu0 %v734
        %v1609 = vpop.f32.mrf.mxu0
        %v1610 = vadd.f32 0.0, %v1609
        %v1611 = vpop.f32.mrf.mxu0
        %1612 = vmatprep.mubr.f32.mxu0 0.0
        %1613 = vmatmul.mubr.f32.gmra.mxu0 %v735
        %v1614 = vpop.f32.mrf.mxu0
        %v1615 = vadd.f32 0.0, %v1614
        %v1616 = vpop.f32.mrf.mxu0
        %1617 = vdwg.mxu0
        %v1618 = vadd.f32 %v480, %v851
        %v1619 = vadd.f32 %v481, %v853
        %v1620 = vadd.f32 %v482, %v1300
        %v1621 = vadd.f32 %v483, %v857
        %v1622 = vadd.f32 %v484, %v859
        %v1623 = vadd.f32 %v485, %v1305
        %v1624 = vadd.f32 %v486, %v863
        %v1625 = vadd.f32 %v487, %v865
        %v1626 = vadd.f32 %v488, %v1310
        %v1627 = vadd.f32 %v489, %v869
        %v1628 = vadd.f32 %v490, %v871
        %v1629 = vadd.f32 %v491, %v1315
        %v1630 = vadd.f32 %v492, %v875
        %v1631 = vadd.f32 %v493, %v877
        %v1632 = vadd.f32 %v494, %v1320
        %v1633 = vadd.f32 %v495, %v881
        %v1634 = vadd.f32 %v496, %v883
        %v1635 = vadd.f32 %v497, %v1325
        %v1636 = vadd.f32 %v498, %v887
        %v1637 = vadd.f32 %v499, %v889
        %v1638 = vadd.f32 %v500, %v1330
        %v1639 = vadd.f32 %v501, %v893
        %v1640 = vadd.f32 %v502, %v895
        %v1641 = vadd.f32 %v503, %v1335
        %v1642 = vadd.f32 %v504, %v899
        %v1643 = vadd.f32 %v505, %v901
        %v1644 = vadd.f32 %v506, %v1340
        %v1645 = vadd.f32 %v507, %v905
        %v1646 = vadd.f32 %v508, %v907
        %v1647 = vadd.f32 %v509, %v1345
        %v1648 = vadd.f32 %v510, %v911
        %v1649 = vadd.f32 %v511, %v913
        %v1650 = vadd.f32 %v512, %v1350
        %v1651 = vadd.f32 %v513, %v917
        %v1652 = vadd.f32 %v514, %v919
        %v1653 = vadd.f32 %v515, %v1355
        %v1654 = vadd.f32 %v516, %v923
        %v1655 = vadd.f32 %v517, %v925
        %v1656 = vadd.f32 %v518, %v1360
        %v1657 = vadd.f32 %v519, %v929
        %v1658 = vadd.f32 %v520, %v931
        %v1659 = vadd.f32 %v521, %v1365
        %v1660 = vadd.f32 %v522, %v935
        %v1661 = vadd.f32 %v523, %v937
        %v1662 = vadd.f32 %v524, %v1370
        %v1663 = vadd.f32 %v525, %v941
        %v1664 = vadd.f32 %v526, %v943
        %v1665 = vadd.f32 %v527, %v1375
        %v1666 = vadd.f32 %v528, %v947
        %v1667 = vadd.f32 %v529, %v949
        %v1668 = vadd.f32 %v530, %v1380
        %v1669 = vadd.f32 %v531, %v953
        %v1670 = vadd.f32 %v532, %v955
        %v1671 = vadd.f32 %v533, %v1385
        %v1672 = vadd.f32 %v534, %v959
        %v1673 = vadd.f32 %v535, %v961
        %v1674 = vadd.f32 %v536, %v1390
        %v1675 = vadd.f32 %v537, %v965
        %v1676 = vadd.f32 %v538, %v967
        %v1677 = vadd.f32 %v539, %v1395
        %v1678 = vadd.f32 %v540, %v971
        %v1679 = vadd.f32 %v541, %v973
        %v1680 = vadd.f32 %v542, %v1400
        %v1681 = vadd.f32 %v543, %v977
        %v1682 = vadd.f32 %v544, %v979
        %v1683 = vadd.f32 %v545, %v1405
        %v1684 = vadd.f32 %v546, %v983
        %v1685 = vadd.f32 %v547, %v985
        %v1686 = vadd.f32 %v548, %v1410
        %v1687 = vadd.f32 %v549, %v989
        %v1688 = vadd.f32 %v550, %v991
        %v1689 = vadd.f32 %v551, %v1415
        %v1690 = vadd.f32 %v552, %v995
        %v1691 = vadd.f32 %v553, %v997
        %v1692 = vadd.f32 %v554, %v1420
        %v1693 = vadd.f32 %v555, %v1001
        %v1694 = vadd.f32 %v556, %v1003
        %v1695 = vadd.f32 %v557, %v1425
        %v1696 = vadd.f32 %v558, %v1007
        %v1697 = vadd.f32 %v559, %v1009
        %v1698 = vadd.f32 %v560, %v1430
        %v1699 = vadd.f32 %v561, %v1013
        %v1700 = vadd.f32 %v562, %v1015
        %v1701 = vadd.f32 %v563, %v1435
        %v1702 = vadd.f32 %v564, %v1019
        %v1703 = vadd.f32 %v565, %v1021
        %v1704 = vadd.f32 %v566, %v1440
        %v1705 = vadd.f32 %v567, %v1025
        %v1706 = vadd.f32 %v568, %v1027
        %v1707 = vadd.f32 %v569, %v1445
        %v1708 = vadd.f32 %v570, %v1031
        %v1709 = vadd.f32 %v571, %v1033
        %v1710 = vadd.f32 %v572, %v1450
        %v1711 = vadd.f32 %v573, %v1037
        %v1712 = vadd.f32 %v574, %v1039
        %v1713 = vadd.f32 %v575, %v1455
        %v1714 = vadd.f32 %v576, %v1043
        %v1715 = vadd.f32 %v577, %v1045
        %v1716 = vadd.f32 %v578, %v1460
        %v1717 = vadd.f32 %v579, %v1049
        %v1718 = vadd.f32 %v580, %v1051
        %v1719 = vadd.f32 %v581, %v1465
        %v1720 = vadd.f32 %v582, %v1055
        %v1721 = vadd.f32 %v583, %v1057
        %v1722 = vadd.f32 %v584, %v1470
        %v1723 = vadd.f32 %v585, %v1061
        %v1724 = vadd.f32 %v586, %v1063
        %v1725 = vadd.f32 %v587, %v1475
        %v1726 = vadd.f32 %v588, %v1067
        %v1727 = vadd.f32 %v589, %v1069
        %v1728 = vadd.f32 %v590, %v1480
        %v1729 = vadd.f32 %v591, %v1073
        %v1730 = vadd.f32 %v592, %v1075
        %v1731 = vadd.f32 %v593, %v1485
        %v1732 = vadd.f32 %v594, %v1079
        %v1733 = vadd.f32 %v595, %v1081
        %v1734 = vadd.f32 %v596, %v1490
        %v1735 = vadd.f32 %v597, %v1085
        %v1736 = vadd.f32 %v598, %v1087
        %v1737 = vadd.f32 %v599, %v1495
        %v1738 = vadd.f32 %v600, %v1091
        %v1739 = vadd.f32 %v601, %v1093
        %v1740 = vadd.f32 %v602, %v1500
        %v1741 = vadd.f32 %v603, %v1097
        %v1742 = vadd.f32 %v604, %v1099
        %v1743 = vadd.f32 %v605, %v1505
        %v1744 = vadd.f32 %v606, %v1103
        %v1745 = vadd.f32 %v607, %v1105
        %v1746 = vadd.f32 %v608, %v1510
        %v1747 = vadd.f32 %v609, %v1109
        %v1748 = vadd.f32 %v610, %v1111
        %v1749 = vadd.f32 %v611, %v1515
        %v1750 = vadd.f32 %v612, %v1115
        %v1751 = vadd.f32 %v613, %v1117
        %v1752 = vadd.f32 %v614, %v1520
        %v1753 = vadd.f32 %v615, %v1121
        %v1754 = vadd.f32 %v616, %v1123
        %v1755 = vadd.f32 %v617, %v1525
        %v1756 = vadd.f32 %v618, %v1127
        %v1757 = vadd.f32 %v619, %v1129
        %v1758 = vadd.f32 %v620, %v1530
        %v1759 = vadd.f32 %v621, %v1133
        %v1760 = vadd.f32 %v622, %v1135
        %v1761 = vadd.f32 %v623, %v1535
        %v1762 = vadd.f32 %v624, %v1139
        %v1763 = vadd.f32 %v625, %v1141
        %v1764 = vadd.f32 %v626, %v1540
        %v1765 = vadd.f32 %v627, %v1145
        %v1766 = vadd.f32 %v628, %v1147
        %v1767 = vadd.f32 %v629, %v1545
        %v1768 = vadd.f32 %v630, %v1151
        %v1769 = vadd.f32 %v631, %v1153
        %v1770 = vadd.f32 %v632, %v1550
        %v1771 = vadd.f32 %v633, %v1157
        %v1772 = vadd.f32 %v634, %v1159
        %v1773 = vadd.f32 %v635, %v1555
        %v1774 = vadd.f32 %v636, %v1163
        %v1775 = vadd.f32 %v637, %v1165
        %v1776 = vadd.f32 %v638, %v1560
        %v1777 = vadd.f32 %v639, %v1169
        %v1778 = vadd.f32 %v640, %v1171
        %v1779 = vadd.f32 %v641, %v1565
        %v1780 = vadd.f32 %v642, %v1175
        %v1781 = vadd.f32 %v643, %v1177
        %v1782 = vadd.f32 %v644, %v1570
        %v1783 = vadd.f32 %v645, %v1181
        %v1784 = vadd.f32 %v646, %v1183
        %v1785 = vadd.f32 %v647, %v1575
        %v1786 = vadd.f32 %v648, %v1187
        %v1787 = vadd.f32 %v649, %v1189
        %v1788 = vadd.f32 %v650, %v1580
        %v1789 = vadd.f32 %v651, %v1193
        %v1790 = vadd.f32 %v652, %v1195
        %v1791 = vadd.f32 %v653, %v1585
        %v1792 = vadd.f32 %v654, %v1199
        %v1793 = vadd.f32 %v655, %v1201
        %v1794 = vadd.f32 %v656, %v1590
        %v1795 = vadd.f32 %v657, %v1205
        %v1796 = vadd.f32 %v658, %v1207
        %v1797 = vadd.f32 %v659, %v1595
        %v1798 = vadd.f32 %v660, %v1211
        %v1799 = vadd.f32 %v661, %v1213
        %v1800 = vadd.f32 %v662, %v1600
        %v1801 = vadd.f32 %v663, %v1217
        %v1802 = vadd.f32 %v664, %v1219
        %v1803 = vadd.f32 %v665, %v1605
        %v1804 = vadd.f32 %v666, %v1223
        %v1805 = vadd.f32 %v667, %v1225
        %v1806 = vadd.f32 %v668, %v1610
        %v1807 = vadd.f32 %v669, %v1229
        %v1808 = vadd.f32 %v670, %v1231
        %v1809 = vadd.f32 %v671, %v1615
        %1810 = vst [vmem:[%s260] sm:$0xff] %v1618
        %1811 = vst [vmem:[%s260 + $0x8] sm:$0xff] %v1619
        %1812 = vst [vmem:[%s260 + $0x10] sm:$0xff] %v1620
        %1813 = vst [vmem:[%s260 + $0x18] sm:$0xff] %v1621
        %1814 = vst [vmem:[%s260 + $0x20] sm:$0xff] %v1622
        %1815 = vst [vmem:[%s260 + $0x28] sm:$0xff] %v1623
        %1816 = vst [vmem:[%s260 + $0x30] sm:$0xff] %v1624
        %1817 = vst [vmem:[%s260 + $0x38] sm:$0xff] %v1625
        %1818 = vst [vmem:[%s260 + $0x40] sm:$0xff] %v1626
        %1819 = vst [vmem:[%s260 + $0x48] sm:$0xff] %v1627
        %1820 = vst [vmem:[%s260 + $0x50] sm:$0xff] %v1628
        %1821 = vst [vmem:[%s260 + $0x58] sm:$0xff] %v1629
        %1822 = vst [vmem:[%s260 + $0x60] sm:$0xff] %v1630
        %1823 = vst [vmem:[%s260 + $0x68] sm:$0xff] %v1631
        %1824 = vst [vmem:[%s260 + $0x70] sm:$0xff] %v1632
        %1825 = vst [vmem:[%s260 + $0x78] sm:$0xff] %v1633
        %1826 = vst [vmem:[%s260 + $0x80] sm:$0xff] %v1634
        %1827 = vst [vmem:[%s260 + $0x88] sm:$0xff] %v1635
        %1828 = vst [vmem:[%s260 + $0x90] sm:$0xff] %v1636
        %1829 = vst [vmem:[%s260 + $0x98] sm:$0xff] %v1637
        %1830 = vst [vmem:[%s260 + $0xa0] sm:$0xff] %v1638
        %1831 = vst [vmem:[%s260 + $0xa8] sm:$0xff] %v1639
        %1832 = vst [vmem:[%s260 + $0xb0] sm:$0xff] %v1640
        %1833 = vst [vmem:[%s260 + $0xb8] sm:$0xff] %v1641
        %1834 = vst [vmem:[%s260 + $0xc0] sm:$0xff] %v1642
        %1835 = vst [vmem:[%s260 + $0xc8] sm:$0xff] %v1643
        %1836 = vst [vmem:[%s260 + $0xd0] sm:$0xff] %v1644
        %1837 = vst [vmem:[%s260 + $0xd8] sm:$0xff] %v1645
        %1838 = vst [vmem:[%s260 + $0xe0] sm:$0xff] %v1646
        %1839 = vst [vmem:[%s260 + $0xe8] sm:$0xff] %v1647
        %1840 = vst [vmem:[%s260 + $0xf0] sm:$0xff] %v1648
        %1841 = vst [vmem:[%s260 + $0xf8] sm:$0xff] %v1649
        %1842 = vst [vmem:[%s260 + $0x100] sm:$0xff] %v1650
        %1843 = vst [vmem:[%s260 + $0x108] sm:$0xff] %v1651
        %1844 = vst [vmem:[%s260 + $0x110] sm:$0xff] %v1652
        %1845 = vst [vmem:[%s260 + $0x118] sm:$0xff] %v1653
        %1846 = vst [vmem:[%s260 + $0x120] sm:$0xff] %v1654
        %1847 = vst [vmem:[%s260 + $0x128] sm:$0xff] %v1655
        %1848 = vst [vmem:[%s260 + $0x130] sm:$0xff] %v1656
        %1849 = vst [vmem:[%s260 + $0x138] sm:$0xff] %v1657
        %1850 = vst [vmem:[%s260 + $0x140] sm:$0xff] %v1658
        %1851 = vst [vmem:[%s260 + $0x148] sm:$0xff] %v1659
        %1852 = vst [vmem:[%s260 + $0x150] sm:$0xff] %v1660
        %1853 = vst [vmem:[%s260 + $0x158] sm:$0xff] %v1661
        %1854 = vst [vmem:[%s260 + $0x160] sm:$0xff] %v1662
        %1855 = vst [vmem:[%s260 + $0x168] sm:$0xff] %v1663
        %1856 = vst [vmem:[%s260 + $0x170] sm:$0xff] %v1664
        %1857 = vst [vmem:[%s260 + $0x178] sm:$0xff] %v1665
        %1858 = vst [vmem:[%s260 + $0x180] sm:$0xff] %v1666
        %1859 = vst [vmem:[%s260 + $0x188] sm:$0xff] %v1667
        %1860 = vst [vmem:[%s260 + $0x190] sm:$0xff] %v1668
        %1861 = vst [vmem:[%s260 + $0x198] sm:$0xff] %v1669
        %1862 = vst [vmem:[%s260 + $0x1a0] sm:$0xff] %v1670
        %1863 = vst [vmem:[%s260 + $0x1a8] sm:$0xff] %v1671
        %1864 = vst [vmem:[%s260 + $0x1b0] sm:$0xff] %v1672
        %1865 = vst [vmem:[%s260 + $0x1b8] sm:$0xff] %v1673
        %1866 = vst [vmem:[%s260 + $0x1c0] sm:$0xff] %v1674
        %1867 = vst [vmem:[%s260 + $0x1c8] sm:$0xff] %v1675
        %1868 = vst [vmem:[%s260 + $0x1d0] sm:$0xff] %v1676
        %1869 = vst [vmem:[%s260 + $0x1d8] sm:$0xff] %v1677
        %1870 = vst [vmem:[%s260 + $0x1e0] sm:$0xff] %v1678
        %1871 = vst [vmem:[%s260 + $0x1e8] sm:$0xff] %v1679
        %1872 = vst [vmem:[%s260 + $0x1f0] sm:$0xff] %v1680
        %1873 = vst [vmem:[%s260 + $0x1f8] sm:$0xff] %v1681
        %1874 = vst [vmem:[%s260 + $0x200] sm:$0xff] %v1682
        %1875 = vst [vmem:[%s260 + $0x208] sm:$0xff] %v1683
        %1876 = vst [vmem:[%s260 + $0x210] sm:$0xff] %v1684
        %1877 = vst [vmem:[%s260 + $0x218] sm:$0xff] %v1685
        %1878 = vst [vmem:[%s260 + $0x220] sm:$0xff] %v1686
        %1879 = vst [vmem:[%s260 + $0x228] sm:$0xff] %v1687
        %1880 = vst [vmem:[%s260 + $0x230] sm:$0xff] %v1688
        %1881 = vst [vmem:[%s260 + $0x238] sm:$0xff] %v1689
        %1882 = vst [vmem:[%s260 + $0x240] sm:$0xff] %v1690
        %1883 = vst [vmem:[%s260 + $0x248] sm:$0xff] %v1691
        %1884 = vst [vmem:[%s260 + $0x250] sm:$0xff] %v1692
        %1885 = vst [vmem:[%s260 + $0x258] sm:$0xff] %v1693
        %1886 = vst [vmem:[%s260 + $0x260] sm:$0xff] %v1694
        %1887 = vst [vmem:[%s260 + $0x268] sm:$0xff] %v1695
        %1888 = vst [vmem:[%s260 + $0x270] sm:$0xff] %v1696
        %1889 = vst [vmem:[%s260 + $0x278] sm:$0xff] %v1697
        %1890 = vst [vmem:[%s260 + $0x280] sm:$0xff] %v1698
        %1891 = vst [vmem:[%s260 + $0x288] sm:$0xff] %v1699
        %1892 = vst [vmem:[%s260 + $0x290] sm:$0xff] %v1700
        %1893 = vst [vmem:[%s260 + $0x298] sm:$0xff] %v1701
        %1894 = vst [vmem:[%s260 + $0x2a0] sm:$0xff] %v1702
        %1895 = vst [vmem:[%s260 + $0x2a8] sm:$0xff] %v1703
        %1896 = vst [vmem:[%s260 + $0x2b0] sm:$0xff] %v1704
        %1897 = vst [vmem:[%s260 + $0x2b8] sm:$0xff] %v1705
        %1898 = vst [vmem:[%s260 + $0x2c0] sm:$0xff] %v1706
        %1899 = vst [vmem:[%s260 + $0x2c8] sm:$0xff] %v1707
        %1900 = vst [vmem:[%s260 + $0x2d0] sm:$0xff] %v1708
        %1901 = vst [vmem:[%s260 + $0x2d8] sm:$0xff] %v1709
        %1902 = vst [vmem:[%s260 + $0x2e0] sm:$0xff] %v1710
        %1903 = vst [vmem:[%s260 + $0x2e8] sm:$0xff] %v1711
        %1904 = vst [vmem:[%s260 + $0x2f0] sm:$0xff] %v1712
        %1905 = vst [vmem:[%s260 + $0x2f8] sm:$0xff] %v1713
        %1906 = vst [vmem:[%s260 + $0x300] sm:$0xff] %v1714
        %1907 = vst [vmem:[%s260 + $0x308] sm:$0xff] %v1715
        %1908 = vst [vmem:[%s260 + $0x310] sm:$0xff] %v1716
        %1909 = vst [vmem:[%s260 + $0x318] sm:$0xff] %v1717
        %1910 = vst [vmem:[%s260 + $0x320] sm:$0xff] %v1718
        %1911 = vst [vmem:[%s260 + $0x328] sm:$0xff] %v1719
        %1912 = vst [vmem:[%s260 + $0x330] sm:$0xff] %v1720
        %1913 = vst [vmem:[%s260 + $0x338] sm:$0xff] %v1721
        %1914 = vst [vmem:[%s260 + $0x340] sm:$0xff] %v1722
        %1915 = vst [vmem:[%s260 + $0x348] sm:$0xff] %v1723
        %1916 = vst [vmem:[%s260 + $0x350] sm:$0xff] %v1724
        %1917 = vst [vmem:[%s260 + $0x358] sm:$0xff] %v1725
        %1918 = vst [vmem:[%s260 + $0x360] sm:$0xff] %v1726
        %1919 = vst [vmem:[%s260 + $0x368] sm:$0xff] %v1727
        %1920 = vst [vmem:[%s260 + $0x370] sm:$0xff] %v1728
        %1921 = vst [vmem:[%s260 + $0x378] sm:$0xff] %v1729
        %1922 = vst [vmem:[%s260 + $0x380] sm:$0xff] %v1730
        %1923 = vst [vmem:[%s260 + $0x388] sm:$0xff] %v1731
        %1924 = vst [vmem:[%s260 + $0x390] sm:$0xff] %v1732
        %1925 = vst [vmem:[%s260 + $0x398] sm:$0xff] %v1733
        %1926 = vst [vmem:[%s260 + $0x3a0] sm:$0xff] %v1734
        %1927 = vst [vmem:[%s260 + $0x3a8] sm:$0xff] %v1735
        %1928 = vst [vmem:[%s260 + $0x3b0] sm:$0xff] %v1736
        %1929 = vst [vmem:[%s260 + $0x3b8] sm:$0xff] %v1737
        %1930 = vst [vmem:[%s260 + $0x3c0] sm:$0xff] %v1738
        %1931 = vst [vmem:[%s260 + $0x3c8] sm:$0xff] %v1739
        %1932 = vst [vmem:[%s260 + $0x3d0] sm:$0xff] %v1740
        %1933 = vst [vmem:[%s260 + $0x3d8] sm:$0xff] %v1741
        %1934 = vst [vmem:[%s260 + $0x3e0] sm:$0xff] %v1742
        %1935 = vst [vmem:[%s260 + $0x3e8] sm:$0xff] %v1743
        %1936 = vst [vmem:[%s260 + $0x3f0] sm:$0xff] %v1744
        %1937 = vst [vmem:[%s260 + $0x3f8] sm:$0xff] %v1745
        %1938 = vst [vmem:[%s260 + $0x400] sm:$0xff] %v1746
        %1939 = vst [vmem:[%s260 + $0x408] sm:$0xff] %v1747
        %1940 = vst [vmem:[%s260 + $0x410] sm:$0xff] %v1748
        %1941 = vst [vmem:[%s260 + $0x418] sm:$0xff] %v1749
        %1942 = vst [vmem:[%s260 + $0x420] sm:$0xff] %v1750
        %1943 = vst [vmem:[%s260 + $0x428] sm:$0xff] %v1751
        %1944 = vst [vmem:[%s260 + $0x430] sm:$0xff] %v1752
        %1945 = vst [vmem:[%s260 + $0x438] sm:$0xff] %v1753
        %1946 = vst [vmem:[%s260 + $0x440] sm:$0xff] %v1754
        %1947 = vst [vmem:[%s260 + $0x448] sm:$0xff] %v1755
        %1948 = vst [vmem:[%s260 + $0x450] sm:$0xff] %v1756
        %1949 = vst [vmem:[%s260 + $0x458] sm:$0xff] %v1757
        %1950 = vst [vmem:[%s260 + $0x460] sm:$0xff] %v1758
        %1951 = vst [vmem:[%s260 + $0x468] sm:$0xff] %v1759
        %1952 = vst [vmem:[%s260 + $0x470] sm:$0xff] %v1760
        %1953 = vst [vmem:[%s260 + $0x478] sm:$0xff] %v1761
        %1954 = vst [vmem:[%s260 + $0x480] sm:$0xff] %v1762
        %1955 = vst [vmem:[%s260 + $0x488] sm:$0xff] %v1763
        %1956 = vst [vmem:[%s260 + $0x490] sm:$0xff] %v1764
        %1957 = vst [vmem:[%s260 + $0x498] sm:$0xff] %v1765
        %1958 = vst [vmem:[%s260 + $0x4a0] sm:$0xff] %v1766
        %1959 = vst [vmem:[%s260 + $0x4a8] sm:$0xff] %v1767
        %1960 = vst [vmem:[%s260 + $0x4b0] sm:$0xff] %v1768
        %1961 = vst [vmem:[%s260 + $0x4b8] sm:$0xff] %v1769
        %1962 = vst [vmem:[%s260 + $0x4c0] sm:$0xff] %v1770
        %1963 = vst [vmem:[%s260 + $0x4c8] sm:$0xff] %v1771
        %1964 = vst [vmem:[%s260 + $0x4d0] sm:$0xff] %v1772
        %1965 = vst [vmem:[%s260 + $0x4d8] sm:$0xff] %v1773
        %1966 = vst [vmem:[%s260 + $0x4e0] sm:$0xff] %v1774
        %1967 = vst [vmem:[%s260 + $0x4e8] sm:$0xff] %v1775
        %1968 = vst [vmem:[%s260 + $0x4f0] sm:$0xff] %v1776
        %1969 = vst [vmem:[%s260 + $0x4f8] sm:$0xff] %v1777
        %1970 = vst [vmem:[%s260 + $0x500] sm:$0xff] %v1778
        %1971 = vst [vmem:[%s260 + $0x508] sm:$0xff] %v1779
        %1972 = vst [vmem:[%s260 + $0x510] sm:$0xff] %v1780
        %1973 = vst [vmem:[%s260 + $0x518] sm:$0xff] %v1781
        %1974 = vst [vmem:[%s260 + $0x520] sm:$0xff] %v1782
        %1975 = vst [vmem:[%s260 + $0x528] sm:$0xff] %v1783
        %1976 = vst [vmem:[%s260 + $0x530] sm:$0xff] %v1784
        %1977 = vst [vmem:[%s260 + $0x538] sm:$0xff] %v1785
        %1978 = vst [vmem:[%s260 + $0x540] sm:$0xff] %v1786
        %1979 = vst [vmem:[%s260 + $0x548] sm:$0xff] %v1787
        %1980 = vst [vmem:[%s260 + $0x550] sm:$0xff] %v1788
        %1981 = vst [vmem:[%s260 + $0x558] sm:$0xff] %v1789
        %1982 = vst [vmem:[%s260 + $0x560] sm:$0xff] %v1790
        %1983 = vst [vmem:[%s260 + $0x568] sm:$0xff] %v1791
        %1984 = vst [vmem:[%s260 + $0x570] sm:$0xff] %v1792
        %1985 = vst [vmem:[%s260 + $0x578] sm:$0xff] %v1793
        %1986 = vst [vmem:[%s260 + $0x580] sm:$0xff] %v1794
        %1987 = vst [vmem:[%s260 + $0x588] sm:$0xff] %v1795
        %1988 = vst [vmem:[%s260 + $0x590] sm:$0xff] %v1796
        %1989 = vst [vmem:[%s260 + $0x598] sm:$0xff] %v1797
        %1990 = vst [vmem:[%s260 + $0x5a0] sm:$0xff] %v1798
        %1991 = vst [vmem:[%s260 + $0x5a8] sm:$0xff] %v1799
        %1992 = vst [vmem:[%s260 + $0x5b0] sm:$0xff] %v1800
        %1993 = vst [vmem:[%s260 + $0x5b8] sm:$0xff] %v1801
        %1994 = vst [vmem:[%s260 + $0x5c0] sm:$0xff] %v1802
        %1995 = vst [vmem:[%s260 + $0x5c8] sm:$0xff] %v1803
        %1996 = vst [vmem:[%s260 + $0x5d0] sm:$0xff] %v1804
        %1997 = vst [vmem:[%s260 + $0x5d8] sm:$0xff] %v1805
        %1998 = vst [vmem:[%s260 + $0x5e0] sm:$0xff] %v1806
        %1999 = vst [vmem:[%s260 + $0x5e8] sm:$0xff] %v1807
        %2000 = vst [vmem:[%s260 + $0x5f0] sm:$0xff] %v1808
        %2001 = vst [vmem:[%s260 + $0x5f8] sm:$0xff] %v1809
        %s2002 = sand.u32 %s132, 1
        %s2003 = scalar_lea.sflag [#allocation4], %s2002
        %s2004 = sand.u32 %s132, 1
        %s2005 = smul.addr %s2004, 1536
        %s2006 = scalar_lea.vmem [#allocation8], %s2005
        // Predicated region
        $region49: #{tpu_custom_call.1} parent=31 // pred_check
          %p2007 = pneg %p142
        $region50: #{tpu_custom_call.1} parent=31 // pred_check_branch
          %2009 = sbr.rel (%p2007) target = $region52
        $region51: #{tpu_custom_call.1} parent=31 // pred_region
          %s2010 = smul.u32 64, %s26
          %s2011 = smul.u32 3, %s27
          %s2013 = ssub.s32 24576, 24576
          %2014 = vsyncadd %s2003, %s2013
          %s2015 = smul.addr %s2010, 3
          %s2016 = sadd.s32 %s2011, %s2015
          %s2017 = smul.addr %s2016, 128
          %s2018 = scalar_lea.hbm %s3, %s2017
          %s2019 = sshll.u32 %s2006, 4
          %s2020 = int_to_ptr.vmem [resolvable:$true] %s2019
          %2025 = dma.vmem_to_hbm [thread:$0]  %s2020, 24576, %s2018, %s2003, 384, 384, 24
        $region52: #{tpu_custom_call.1} parent=31 // pred_fallthru
          _
      $region32: #{tpu_custom_call.1} parent=5 // pred_fallthru
        _
      %p2026 = scmp.le.s32.totalorder 2, %s16
      // Predicated region
      $region53: #{tpu_custom_call.1} parent=5 // pred_check
        %p2027 = pneg %p2026
      $region54: #{tpu_custom_call.1} parent=5 // pred_check_branch
        %2029 = sbr.rel (%p2027) target = $region56
      $region55: #{tpu_custom_call.1} parent=5 // pred_region
        %s2030 = ssub.s32 %s16, 2
        // Predicated region
        $region57: #{tpu_custom_call.1} parent=55 // pred_check
          %p2031 = pneg %p148
        $region58: #{tpu_custom_call.1} parent=55 // pred_check_branch
          %2033 = sbr.rel (%p2031) target = $region60
        $region59: #{tpu_custom_call.1} parent=55 // pred_region
          %s2034 = sand.u32 %s133, 1
          %s2035 = scalar_lea.sflag [#allocation4], %s2034
          %s2036 = sand.u32 %s133, 1
          %s2037 = smul.addr %s2036, 1536
          %s2038 = scalar_lea.vmem [#allocation8], %s2037
          %2039 = dma.done %s2035, 24576
        $region60: #{tpu_custom_call.1} parent=55 // pred_fallthru
          _
      $region56: #{tpu_custom_call.1} parent=5 // pred_fallthru
        _
    $region6: #{tpu_custom_call.1} parent=1 // loop_footer
      %s20 = sadd.s32 1, %s16
    $region7: #{tpu_custom_call.1} parent=1 // loop_footer_branch
      %15 = sbr.rel target = $region3
    $region8: #{tpu_custom_call.1} parent=1 // loop_exit
      _
    %2040 = vsyncpa [#allocation3], 1
    %s2041 = scalar_lea.sflag [#allocation3], 1
    %2042 = vsyncpa %s2041, 1
    %2043 = vsyncpa [#allocation6], 1
    %2044 = vsyncpa [#allocation4], 1
    %s2045 = scalar_lea.sflag [#allocation4], 1
    %2046 = vsyncpa %s2045, 1

</llo_original>
